<compile_context>
chip_gen: v7x
topology: tpu7x:2x2x1
jax: 0.10.0
libtpu: 0.0.40
codegen_flags: <defaults>
</compile_context>

<pallas_src>
import math

import numpy as np
import jax
import jax.numpy as jnp
from jax.experimental import pallas as pl
from jax.experimental.pallas import tpu as pltpu


# ----------------------------------------------------------------------------
# Constant-matrix builders (pure glue, computed once in numpy)
# ----------------------------------------------------------------------------
def _bilinear_matrix(out_size, in_size):
    """align_corners=True bilinear interpolation matrix, shape (out, in)."""
    if in_size == 1:
        return np.ones((out_size, 1), np.float32)
    src = np.arange(out_size, dtype=np.float64) * (in_size - 1) / (out_size - 1)
    f = np.clip(np.floor(src).astype(np.int64), 0, in_size - 2)
    frac = src - f
    M = np.zeros((out_size, in_size), np.float64)
    M[np.arange(out_size), f] += 1.0 - frac
    M[np.arange(out_size), f + 1] += frac
    return M.astype(np.float32)


def _pool_matrix(Hh, Wh, factor):
    """AvgPool2d(kernel=stride=factor) as a matrix (Hh*Wh, H*W)."""
    H, W = Hh * factor, Wh * factor
    P = np.zeros((Hh * Wh, H * W), np.float32)
    inv = 1.0 / (factor * factor)
    for i in range(Hh):
        for j in range(Wh):
            for a in range(factor):
                for b in range(factor):
                    P[i * Wh + j, (factor * i + a) * W + (factor * j + b)] = inv
    return P


def _shift_matrices(Hh, Wh):
    """Zero-padded spatial shifts for a 3x3 conv, shape (9, Hh*Wh, Hh*Wh)."""
    S = np.zeros((9, Hh * Wh, Hh * Wh), np.float32)
    for ky in range(3):
        for kx in range(3):
            t = ky * 3 + kx
            dy, dx = ky - 1, kx - 1
            for i in range(Hh):
                for j in range(Wh):
                    ii, jj = i + dy, j + dx
                    if 0 <= ii < Hh and 0 <= jj < Wh:
                        S[t, i * Wh + j, ii * Wh + jj] = 1.0
    return S


# ----------------------------------------------------------------------------
# Pallas kernel: one batch item per grid step (channel-major layout)
# ----------------------------------------------------------------------------
def _netm_kernel(lower_ref, higher_ref, UT_ref, PST_ref, aff_ref, bg_ref,
                 wconv_ref, A_ref, pruned_ref, enh_ref):
    f32 = jnp.float32
    C = lower_ref.shape[1]
    HWh = higher_ref.shape[2]

    lower = lower_ref[0]                                   # (C, HW)   f32
    hi = higher_ref[0]                                     # (C, HWh)  f32
    aff = aff_ref[...]                                     # (C, 4)    f32
    wg = aff[:, 0:1]                                       # gate 1x1 weights
    bconv = aff[:, 1:2]                                    # conv bias
    gamma = aff[:, 2:3]                                    # GN weight
    beta = aff[:, 3:4]                                     # GN bias

    # ---- NEModule: gate = sigmoid(conv1x1(upsample(hi))) ----
    # One lane-dense (C,HWh)x(HWh,HW) f32 matmul; 1x1 conv = VPU mul + XLU
    # cross-sublane reduce (no M=1 MXU ops on the critical path).
    hi_up = jnp.dot(hi, UT_ref[...], preferred_element_type=f32)        # (C, HW)
    logit = jnp.sum(wg * hi_up, axis=0, keepdims=True) + bg_ref[0]      # (1, HW)
    gate = jax.nn.sigmoid(logit)

    es = lower * gate                                                   # (C, HW)
    pruned_ref[0] = lower * (1.0 - gate)                                # lane-dense store

    # ---- NTModule: pool + 9 conv-tap shifts in ONE bf16 matmul ----
    es_b = es.astype(jnp.bfloat16)
    x2 = jnp.dot(es_b, PST_ref[...], preferred_element_type=f32)        # (C, 9*HWh) f32
    # Rearrange (C, 9*HWh) -> (9C, HWh); K-order of wconv is tap-major (k = t*C + ci),
    # so this is 9 static lane-slices + one sublane concat (proven-lowerable pattern).
    xk = jnp.concatenate([x2[:, t * HWh:(t + 1) * HWh] for t in range(9)],
                         axis=0).astype(jnp.bfloat16)                   # (9C, HWh)
    y = jnp.dot(wconv_ref[...], xk, preferred_element_type=f32) + bconv  # (C, HWh) f32

    # ---- GroupNorm: XLU lane sums + one tiny block-diagonal matmul ----
    s1 = jnp.sum(y, axis=1, keepdims=True)                              # (C, 1)
    s2 = jnp.sum(y * y, axis=1, keepdims=True)                          # (C, 1)
    stats = jnp.concatenate([s1, s2], axis=1)                           # (C, 2)
    gstat = jnp.dot(A_ref[...], stats, preferred_element_type=f32)      # (C, 2), /(gs*HWh) baked in
    mean_c = gstat[:, 0:1]
    var_c = jnp.maximum(gstat[:, 1:2] - mean_c * mean_c, 0.0)           # clamp for safety
    z = (y - mean_c) * jax.lax.rsqrt(var_c + 1e-5)
    z = z * gamma + beta

    # ---- Mish + residual add ----
    mish = z * jnp.tanh(jax.nn.softplus(z))
    enh_ref[0] = hi + mish


# ----------------------------------------------------------------------------
# Wrapper (NCHW in / NCHW out, like the PyTorch module)
# ----------------------------------------------------------------------------
def netm_forward(lower_nchw, higher_nchw, params, up_factor=4, num_groups=32):
    B, C, H, W = lower_nchw.shape
    _, _, Hh, Wh = higher_nchw.shape
    assert H == Hh * up_factor and W == Wh * up_factor and C % num_groups == 0
    HW, HWh = H * W, Hh * Wh

    # Channel-major layout: free reshapes, no wrapper transposes.
    lower2 = lower_nchw.reshape(B, C, HW)
    higher2 = higher_nchw.reshape(B, C, HWh)

    # Structural constants.
    Ur = _bilinear_matrix(H, Hh)
    Uc = _bilinear_matrix(W, Wh)
    UT = jnp.asarray(np.kron(Ur, Uc).T)                       # (HWh, HW) f32

    # PST = [PT @ S_t^T]_t : avg-pool (incl. 1/16) and all 9 conv-tap shifts
    # folded into one (HW, 9*HWh) constant.  Entries are multiples of 1/16,
    # so the bf16 cast is exact.
    PT = _pool_matrix(Hh, Wh, up_factor).T                     # (HW, HWh)
    S = _shift_matrices(Hh, Wh)                                # (9, HWh, HWh)
    PST_np = np.concatenate([PT @ S[t].T for t in range(9)], axis=1)  # (HW, 9*HWh)
    PST = jnp.asarray(PST_np).astype(jnp.bfloat16)

    # Block-diagonal group averaging (includes the 1/(gs*HWh) normalization).
    gs = C // num_groups
    A_np = np.kron(np.eye(num_groups, dtype=np.float32),
                   np.ones((gs, gs), np.float32)) / float(gs * HWh)
    A = jnp.asarray(A_np)                                      # (C, C)

    # Pack all per-channel vectors into one (C, 4) block: [wg, bconv, gamma, beta].
    aff = jnp.concatenate([
        params['gate_w'].reshape(C, 1),
        params['conv_b'].reshape(C, 1),
        params['gn_w'].reshape(C, 1),
        params['gn_b'].reshape(C, 1)], axis=1).astype(jnp.float32)
    bg = params['gate_b'].reshape(1).astype(jnp.float32)       # SMEM scalar

    # (Cout, Cin, 3, 3) -> (Cout, t*Cin + ci), t = ky*3 + kx  (tap-major K order,
    # matching the in-kernel xk concat); bf16 weights, f32 accumulation.
    wconv = jnp.transpose(params['conv_w'], (0, 2, 3, 1)).reshape(C, 9 * C).astype(jnp.bfloat16)

    pruned2, enh2 = pl.pallas_call(
        _netm_kernel,
        out_shape=(jax.ShapeDtypeStruct((B, C, HW), jnp.float32),
                   jax.ShapeDtypeStruct((B, C, HWh), jnp.float32)),
        grid=(B,),
        in_specs=[
            pl.BlockSpec((1, C, HW), lambda b: (b, 0, 0)),       # lower
            pl.BlockSpec((1, C, HWh), lambda b: (b, 0, 0)),      # higher
            pl.BlockSpec((HWh, HW), lambda b: (0, 0)),           # UT (f32)
            pl.BlockSpec((HW, 9 * HWh), lambda b: (0, 0)),       # PST (bf16)
            pl.BlockSpec((C, 4), lambda b: (0, 0)),              # packed per-channel params
            pl.BlockSpec(memory_space=pltpu.MemorySpace.SMEM),   # gate bias scalar
            pl.BlockSpec((C, 9 * C), lambda b: (0, 0)),          # conv weights (bf16)
            pl.BlockSpec((C, C), lambda b: (0, 0)),              # group-average matrix
        ],
        out_specs=(
            pl.BlockSpec((1, C, HW), lambda b: (b, 0, 0)),
            pl.BlockSpec((1, C, HWh), lambda b: (b, 0, 0)),
        ),
        compiler_params=pltpu.CompilerParams(
            dimension_semantics=("parallel",)),
    )(lower2, higher2, UT, PST, aff, bg, wconv, A)

    pruned = pruned2.reshape(B, C, H, W)
    enhanced = enh2.reshape(B, C, Hh, Wh)
    return pruned, enhanced


# ----------------------------------------------------------------------------
# Plain-JAX reference (independent path, used only for a sanity check)
# ----------------------------------------------------------------------------
def _reference(lower_nchw, higher_nchw, params, up_factor=4, num_groups=32):
    B, C, H, W = lower_nchw.shape
    _, _, Hh, Wh = higher_nchw.shape
    Ur = jnp.asarray(_bilinear_matrix(H, Hh))
    Uc = jnp.asarray(_bilinear_matrix(W, Wh))
    up = jnp.einsum('hp,bcpq,wq->bchw', Ur, higher_nchw, Uc)
    gate = jax.nn.sigmoid(
        jnp.einsum('bchw,oc->bohw', up, params['gate_w'].reshape(1, C))
        + params['gate_b'].reshape(1, 1, 1, 1))
    es = lower_nchw * gate
    pruned = lower_nchw - es
    pooled = es.reshape(B, C, Hh, up_factor, Wh, up_factor).mean(axis=(3, 5))
    conv = jax.lax.conv_general_dilated(
        pooled, params['conv_w'], window_strides=(1, 1), padding='SAME',
        dimension_numbers=('NCHW', 'OIHW', 'NCHW'))
    conv = conv + params['conv_b'].reshape(1, C, 1, 1)
    gs = C // num_groups
    r = conv.reshape(B, num_groups, gs, Hh, Wh)
    mean = r.mean(axis=(2, 3, 4), keepdims=True)
    var = r.var(axis=(2, 3, 4), keepdims=True)
    normed = ((r - mean) / jnp.sqrt(var + 1e-5)).reshape(B, C, Hh, Wh)
    y = normed * params['gn_w'].reshape(1, C, 1, 1) + params['gn_b'].reshape(1, C, 1, 1)
    mish = y * jnp.tanh(jax.nn.softplus(y))
    enhanced = higher_nchw + mish
    return pruned, enhanced


# ----------------------------------------------------------------------------
if __name__ == "__main__":
    B, C, H, W = 2, 64, 16, 16          # internal_channels=64 (divisible by 32 groups)
    Hh, Wh = H // 4, W // 4

    key = jax.random.PRNGKey(0)
    k = jax.random.split(key, 6)
    lower_feats = jax.random.normal(k[0], (B, C, H, W), jnp.float32)
    higher_feats = jax.random.normal(k[1], (B, C, Hh, Wh), jnp.float32)

    # Deterministic synthetic parameters (xavier-normal conv weights,
    # small uniform biases, GN weight=1 bias=0, as in the module's __init__).
    gate_std = math.sqrt(2.0 / (C + 1))
    conv_std = math.sqrt(2.0 / (C * 9 + C * 9))
    params = {
        'gate_w': gate_std * jax.random.normal(k[2], (1, C, 1, 1), jnp.float32),
        'gate_b': (1.0 / math.sqrt(C)) * jax.random.uniform(k[3], (1,), jnp.float32, -1.0, 1.0),
        'conv_w': conv_std * jax.random.normal(k[4], (C, C, 3, 3), jnp.float32),
        'conv_b': (1.0 / math.sqrt(C * 9)) * jax.random.uniform(k[5], (C,), jnp.float32, -1.0, 1.0),
        'gn_w': jnp.ones((C,), jnp.float32),
        'gn_b': jnp.zeros((C,), jnp.float32),
    }

    pruned, enhanced = netm_forward(lower_feats, higher_feats, params)
    jax.block_until_ready((pruned, enhanced))

    pr_ref, en_ref = _reference(lower_feats, higher_feats, params)
    # pruned path is f32 end-to-end (commuted gate is mathematically exact).
    np.testing.assert_allclose(np.asarray(pruned), np.asarray(pr_ref), rtol=2e-3, atol=2e-3)
    # enhanced path uses bf16 MXU operands (f32 accumulation) -> looser tolerance.
    np.testing.assert_allclose(np.asarray(enhanced), np.asarray(en_ref), rtol=2e-2, atol=2e-2)

    print("KERNEL_OK")
</pallas_src>

<mosaic_0001>
module attributes {stable_mosaic.version = 11 : i64} {
  func.func @_netm_kernel(%arg0: i32, %arg1: memref<1x64x256xf32, #tpu.memory_space<vmem>>, %arg2: memref<1x64x16xf32, #tpu.memory_space<vmem>>, %arg3: memref<16x256xf32, #tpu.memory_space<vmem>>, %arg4: memref<256x144xbf16, #tpu.memory_space<vmem>>, %arg5: memref<64x4xf32, #tpu.memory_space<vmem>>, %arg6: memref<1xf32, #tpu.memory_space<smem>>, %arg7: memref<64x576xbf16, #tpu.memory_space<vmem>>, %arg8: memref<64x64xf32, #tpu.memory_space<vmem>>, %arg9: memref<1x64x256xf32, #tpu.memory_space<vmem>>, %arg10: memref<1x64x16xf32, #tpu.memory_space<vmem>>) attributes {dimension_semantics = [#tpu.dimension_semantics<parallel>], iteration_bounds = array<i64: 2>, scalar_prefetch = 0 : i64, scratch_operands = 0 : i64, tpu.core_type = #tpu.core_type<tc>, window_params = [{transform_indices = @transform_0, window_bounds = array<i64: 1, 64, 256>}, {transform_indices = @transform_1, window_bounds = array<i64: 1, 64, 16>}, {pipeline_mode = #tpu.pipeline_mode<synchronous>, transform_indices = @transform_2, window_bounds = array<i64: 16, 256>}, {pipeline_mode = #tpu.pipeline_mode<synchronous>, transform_indices = @transform_3, window_bounds = array<i64: 256, 144>}, {pipeline_mode = #tpu.pipeline_mode<synchronous>, transform_indices = @transform_4, window_bounds = array<i64: 64, 4>}, {transform_indices = @transform_5, window_bounds = array<i64: 1>}, {pipeline_mode = #tpu.pipeline_mode<synchronous>, transform_indices = @transform_6, window_bounds = array<i64: 64, 576>}, {pipeline_mode = #tpu.pipeline_mode<synchronous>, transform_indices = @transform_7, window_bounds = array<i64: 64, 64>}, {transform_indices = @transform_8, window_bounds = array<i64: 1, 64, 256>}, {transform_indices = @transform_9, window_bounds = array<i64: 1, 64, 16>}]} {
    %c0 = arith.constant 0 : index
    %c0_0 = arith.constant 0 : index
    %c0_1 = arith.constant 0 : index
    %0 = vector.load %arg1[%c0, %c0_0, %c0_1] : memref<1x64x256xf32, #tpu.memory_space<vmem>>, vector<1x64x256xf32>
    %1 = vector.shape_cast %0 : vector<1x64x256xf32> to vector<64x256xf32>
    %c0_2 = arith.constant 0 : index
    %c0_3 = arith.constant 0 : index
    %c0_4 = arith.constant 0 : index
    %2 = vector.load %arg2[%c0_2, %c0_3, %c0_4] : memref<1x64x16xf32, #tpu.memory_space<vmem>>, vector<1x64x16xf32>
    %3 = vector.shape_cast %2 : vector<1x64x16xf32> to vector<64x16xf32>
    %c0_5 = arith.constant 0 : index
    %c0_6 = arith.constant 0 : index
    %4 = vector.load %arg5[%c0_5, %c0_6] : memref<64x4xf32, #tpu.memory_space<vmem>>, vector<64x4xf32>
    %5 = vector.extract_strided_slice %4 {offsets = [0, 0], sizes = [64, 1], strides = [1, 1]} : vector<64x4xf32> to vector<64x1xf32>
    %6 = vector.extract_strided_slice %4 {offsets = [0, 1], sizes = [64, 1], strides = [1, 1]} : vector<64x4xf32> to vector<64x1xf32>
    %7 = vector.extract_strided_slice %4 {offsets = [0, 2], sizes = [64, 1], strides = [1, 1]} : vector<64x4xf32> to vector<64x1xf32>
    %8 = vector.extract_strided_slice %4 {offsets = [0, 3], sizes = [64, 1], strides = [1, 1]} : vector<64x4xf32> to vector<64x1xf32>
    %c0_7 = arith.constant 0 : index
    %c0_8 = arith.constant 0 : index
    %9 = vector.load %arg3[%c0_7, %c0_8] : memref<16x256xf32, #tpu.memory_space<vmem>>, vector<16x256xf32>
    %cst = arith.constant dense<0.000000e+00> : vector<64x256xf32>
    %10 = tpu.matmul %3, %9, %cst {dimension_numbers = #tpu.dot_dimension_numbers<[1], [0], [0], [1], [0, 0, 1, 1], [], []>} : vector<64x16xf32>, vector<16x256xf32>, vector<64x256xf32> -> vector<64x256xf32>
    %11 = vector.broadcast %5 : vector<64x1xf32> to vector<64x256xf32>
    %12 = arith.mulf %11, %10 : vector<64x256xf32>
    %cst_9 = arith.constant dense<0.000000e+00> : vector<256xf32>
    %13 = vector.multi_reduction <add>, %12, %cst_9 [0] : vector<64x256xf32> to vector<256xf32>
    %14 = vector.shape_cast %13 : vector<256xf32> to vector<1x256xf32>
    %c0_10 = arith.constant 0 : index
    %15 = memref.load %arg6[%c0_10] : memref<1xf32, #tpu.memory_space<smem>>
    %16 = vector.broadcast %15 : f32 to vector<1x256xf32>
    %17 = arith.addf %14, %16 : vector<1x256xf32>
    %18 = arith.negf %17 : vector<1x256xf32>
    %19 = math.exp %18 : vector<1x256xf32>
    %cst_11 = arith.constant 1.000000e+00 : f32
    %20 = vector.broadcast %cst_11 : f32 to vector<1x256xf32>
    %21 = arith.addf %20, %19 : vector<1x256xf32>
    %22 = arith.divf %20, %21 : vector<1x256xf32>
    %23 = vector.broadcast %22 : vector<1x256xf32> to vector<64x256xf32>
    %24 = arith.mulf %1, %23 : vector<64x256xf32>
    %cst_12 = arith.constant 1.000000e+00 : f32
    %25 = vector.broadcast %cst_12 : f32 to vector<1x256xf32>
    %26 = arith.subf %25, %22 : vector<1x256xf32>
    %27 = vector.broadcast %26 : vector<1x256xf32> to vector<64x256xf32>
    %28 = arith.mulf %1, %27 : vector<64x256xf32>
    %c0_13 = arith.constant 0 : index
    %c0_14 = arith.constant 0 : index
    %c0_15 = arith.constant 0 : index
    %29 = vector.load %arg9[%c0_13, %c0_14, %c0_15] : memref<1x64x256xf32, #tpu.memory_space<vmem>>, vector<1x64x256xf32>
    %30 = vector.shape_cast %29 : vector<1x64x256xf32> to vector<64x256xf32>
    %31 = vector.shape_cast %28 : vector<64x256xf32> to vector<1x64x256xf32>
    tpu.vector_store %arg9[%c0_13, %c0_14, %c0_15], %31 {strides = array<i32>} : memref<1x64x256xf32, #tpu.memory_space<vmem>>, vector<1x64x256xf32>,
    %32 = arith.truncf %24 : vector<64x256xf32> to vector<64x256xbf16>
    %c0_16 = arith.constant 0 : index
    %c0_17 = arith.constant 0 : index
    %33 = vector.load %arg4[%c0_16, %c0_17] : memref<256x144xbf16, #tpu.memory_space<vmem>>, vector<256x144xbf16>
    %cst_18 = arith.constant dense<0.000000e+00> : vector<64x144xf32>
    %34 = tpu.matmul %32, %33, %cst_18 {dimension_numbers = #tpu.dot_dimension_numbers<[1], [0], [0], [1], [0, 0, 1, 1], [], []>} : vector<64x256xbf16>, vector<256x144xbf16>, vector<64x144xf32> -> vector<64x144xf32>
    %35 = vector.extract_strided_slice %34 {offsets = [0, 0], sizes = [64, 16], strides = [1, 1]} : vector<64x144xf32> to vector<64x16xf32>
    %36 = vector.extract_strided_slice %34 {offsets = [0, 16], sizes = [64, 16], strides = [1, 1]} : vector<64x144xf32> to vector<64x16xf32>
    %37 = vector.extract_strided_slice %34 {offsets = [0, 32], sizes = [64, 16], strides = [1, 1]} : vector<64x144xf32> to vector<64x16xf32>
    %38 = vector.extract_strided_slice %34 {offsets = [0, 48], sizes = [64, 16], strides = [1, 1]} : vector<64x144xf32> to vector<64x16xf32>
    %39 = vector.extract_strided_slice %34 {offsets = [0, 64], sizes = [64, 16], strides = [1, 1]} : vector<64x144xf32> to vector<64x16xf32>
    %40 = vector.extract_strided_slice %34 {offsets = [0, 80], sizes = [64, 16], strides = [1, 1]} : vector<64x144xf32> to vector<64x16xf32>
    %41 = vector.extract_strided_slice %34 {offsets = [0, 96], sizes = [64, 16], strides = [1, 1]} : vector<64x144xf32> to vector<64x16xf32>
    %42 = vector.extract_strided_slice %34 {offsets = [0, 112], sizes = [64, 16], strides = [1, 1]} : vector<64x144xf32> to vector<64x16xf32>
    %43 = vector.extract_strided_slice %34 {offsets = [0, 128], sizes = [64, 16], strides = [1, 1]} : vector<64x144xf32> to vector<64x16xf32>
    %44 = tpu.concatenate %35, %36, %37, %38, %39, %40, %41, %42, %43 in 0 : vector<64x16xf32>, vector<64x16xf32>, vector<64x16xf32>, vector<64x16xf32>, vector<64x16xf32>, vector<64x16xf32>, vector<64x16xf32>, vector<64x16xf32>, vector<64x16xf32> -> vector<576x16xf32>
    %45 = arith.truncf %44 : vector<576x16xf32> to vector<576x16xbf16>
    %c0_19 = arith.constant 0 : index
    %c0_20 = arith.constant 0 : index
    %46 = vector.load %arg7[%c0_19, %c0_20] : memref<64x576xbf16, #tpu.memory_space<vmem>>, vector<64x576xbf16>
    %cst_21 = arith.constant dense<0.000000e+00> : vector<64x16xf32>
    %47 = tpu.matmul %46, %45, %cst_21 {dimension_numbers = #tpu.dot_dimension_numbers<[1], [0], [0], [1], [0, 0, 1, 1], [], []>} : vector<64x576xbf16>, vector<576x16xbf16>, vector<64x16xf32> -> vector<64x16xf32>
    %48 = vector.broadcast %6 : vector<64x1xf32> to vector<64x16xf32>
    %49 = arith.addf %47, %48 : vector<64x16xf32>
    %cst_22 = arith.constant dense<0.000000e+00> : vector<64xf32>
    %50 = vector.multi_reduction <add>, %49, %cst_22 [1] : vector<64x16xf32> to vector<64xf32>
    %51 = vector.shape_cast %50 : vector<64xf32> to vector<64x1xf32>
    %52 = arith.mulf %49, %49 : vector<64x16xf32>
    %cst_23 = arith.constant dense<0.000000e+00> : vector<64xf32>
    %53 = vector.multi_reduction <add>, %52, %cst_23 [1] : vector<64x16xf32> to vector<64xf32>
    %54 = vector.shape_cast %53 : vector<64xf32> to vector<64x1xf32>
    %55 = tpu.concatenate %51, %54 in 1 : vector<64x1xf32>, vector<64x1xf32> -> vector<64x2xf32>
    %c0_24 = arith.constant 0 : index
    %c0_25 = arith.constant 0 : index
    %56 = vector.load %arg8[%c0_24, %c0_25] : memref<64x64xf32, #tpu.memory_space<vmem>>, vector<64x64xf32>
    %cst_26 = arith.constant dense<0.000000e+00> : vector<64x2xf32>
    %57 = tpu.matmul %56, %55, %cst_26 {dimension_numbers = #tpu.dot_dimension_numbers<[1], [0], [0], [1], [0, 0, 1, 1], [], []>} : vector<64x64xf32>, vector<64x2xf32>, vector<64x2xf32> -> vector<64x2xf32>
    %58 = vector.extract_strided_slice %57 {offsets = [0, 0], sizes = [64, 1], strides = [1, 1]} : vector<64x2xf32> to vector<64x1xf32>
    %59 = vector.extract_strided_slice %57 {offsets = [0, 1], sizes = [64, 1], strides = [1, 1]} : vector<64x2xf32> to vector<64x1xf32>
    %60 = arith.mulf %58, %58 : vector<64x1xf32>
    %61 = arith.subf %59, %60 : vector<64x1xf32>
    %cst_27 = arith.constant 0.000000e+00 : f32
    %62 = vector.broadcast %cst_27 : f32 to vector<64x1xf32>
    %63 = arith.maximumf %61, %62 : vector<64x1xf32>
    %64 = vector.broadcast %58 : vector<64x1xf32> to vector<64x16xf32>
    %65 = arith.subf %49, %64 : vector<64x16xf32>
    %cst_28 = arith.constant 9.99999974E-6 : f32
    %66 = vector.broadcast %cst_28 : f32 to vector<64x1xf32>
    %67 = arith.addf %63, %66 : vector<64x1xf32>
    %68 = math.rsqrt %67 : vector<64x1xf32>
    %69 = vector.broadcast %68 : vector<64x1xf32> to vector<64x16xf32>
    %70 = arith.mulf %65, %69 : vector<64x16xf32>
    %71 = vector.broadcast %7 : vector<64x1xf32> to vector<64x16xf32>
    %72 = arith.mulf %70, %71 : vector<64x16xf32>
    %73 = vector.broadcast %8 : vector<64x1xf32> to vector<64x16xf32>
    %74 = arith.addf %72, %73 : vector<64x16xf32>
    %cst_29 = arith.constant 0.000000e+00 : f32
    %75 = vector.broadcast %cst_29 : f32 to vector<64x16xf32>
    %76 = arith.maximumf %74, %75 : vector<64x16xf32>
    %77 = vector.broadcast %cst_29 : f32 to vector<64x16xf32>
    %78 = arith.subf %74, %77 : vector<64x16xf32>
    %79 = arith.cmpf one, %78, %78 : vector<64x16xf32>
    %80 = vector.broadcast %cst_29 : f32 to vector<64x16xf32>
    %81 = arith.addf %74, %80 : vector<64x16xf32>
    %82 = math.absf %78 : vector<64x16xf32>
    %cst_30 = arith.constant 0.000000e+00 : f32
    %83 = vector.broadcast %cst_30 : f32 to vector<64x16xf32>
    %84 = arith.subf %83, %82 : vector<64x16xf32>
    %85 = math.exp %84 : vector<64x16xf32>
    %86 = math.log1p %85 : vector<64x16xf32>
    %87 = arith.addf %76, %86 : vector<64x16xf32>
    %88 = arith.select %79, %81, %87 : vector<64x16xi1>, vector<64x16xf32>
    %89 = math.tanh %88 : vector<64x16xf32>
    %90 = arith.mulf %74, %89 : vector<64x16xf32>
    %91 = arith.addf %3, %90 : vector<64x16xf32>
    %c0_31 = arith.constant 0 : index
    %c0_32 = arith.constant 0 : index
    %c0_33 = arith.constant 0 : index
    %92 = vector.load %arg10[%c0_31, %c0_32, %c0_33] : memref<1x64x16xf32, #tpu.memory_space<vmem>>, vector<1x64x16xf32>
    %93 = vector.shape_cast %92 : vector<1x64x16xf32> to vector<64x16xf32>
    %94 = vector.shape_cast %91 : vector<64x16xf32> to vector<1x64x16xf32>
    tpu.vector_store %arg10[%c0_31, %c0_32, %c0_33], %94 {strides = array<i32>} : memref<1x64x16xf32, #tpu.memory_space<vmem>>, vector<1x64x16xf32>,
    return
  }
  func.func @transform_0(%arg0: i32) -> (i32, i32, i32) {
    %c0_i32 = arith.constant 0 : i32
    %c0_i32_0 = arith.constant 0 : i32
    %c0_i32_1 = arith.constant 0 : i32
    return %arg0, %c0_i32, %c0_i32_0 : i32, i32, i32
  }
  func.func @transform_1(%arg0: i32) -> (i32, i32, i32) {
    %c0_i32 = arith.constant 0 : i32
    %c0_i32_0 = arith.constant 0 : i32
    %c0_i32_1 = arith.constant 0 : i32
    return %arg0, %c0_i32, %c0_i32_0 : i32, i32, i32
  }
  func.func @transform_2(%arg0: i32) -> (i32, i32) {
    %c0_i32 = arith.constant 0 : i32
    %c0_i32_0 = arith.constant 0 : i32
    %c0_i32_1 = arith.constant 0 : i32
    return %c0_i32, %c0_i32_0 : i32, i32
  }
  func.func @transform_3(%arg0: i32) -> (i32, i32) {
    %c0_i32 = arith.constant 0 : i32
    %c0_i32_0 = arith.constant 0 : i32
    %c0_i32_1 = arith.constant 0 : i32
    return %c0_i32, %c0_i32_0 : i32, i32
  }
  func.func @transform_4(%arg0: i32) -> (i32, i32) {
    %c0_i32 = arith.constant 0 : i32
    %c0_i32_0 = arith.constant 0 : i32
    %c0_i32_1 = arith.constant 0 : i32
    return %c0_i32, %c0_i32_0 : i32, i32
  }
  func.func @transform_5(%arg0: i32) -> i32 {
    %c0_i32 = arith.constant 0 : i32
    %c0_i32_0 = arith.constant 0 : i32
    return %c0_i32 : i32
  }
  func.func @transform_6(%arg0: i32) -> (i32, i32) {
    %c0_i32 = arith.constant 0 : i32
    %c0_i32_0 = arith.constant 0 : i32
    %c0_i32_1 = arith.constant 0 : i32
    return %c0_i32, %c0_i32_0 : i32, i32
  }
  func.func @transform_7(%arg0: i32) -> (i32, i32) {
    %c0_i32 = arith.constant 0 : i32
    %c0_i32_0 = arith.constant 0 : i32
    %c0_i32_1 = arith.constant 0 : i32
    return %c0_i32, %c0_i32_0 : i32, i32
  }
  func.func @transform_8(%arg0: i32) -> (i32, i32, i32) {
    %c0_i32 = arith.constant 0 : i32
    %c0_i32_0 = arith.constant 0 : i32
    %c0_i32_1 = arith.constant 0 : i32
    return %arg0, %c0_i32, %c0_i32_0 : i32, i32, i32
  }
  func.func @transform_9(%arg0: i32) -> (i32, i32, i32) {
    %c0_i32 = arith.constant 0 : i32
    %c0_i32_0 = arith.constant 0 : i32
    %c0_i32_1 = arith.constant 0 : i32
    return %arg0, %c0_i32, %c0_i32_0 : i32, i32, i32
  }
}

</mosaic_0001>

<llo_original>
// kernel: tpu_custom_call.1
$region0: #{tpu_custom_call.1}
  #allocation0 [shape = 'u32[]', space=smem, size = 0x4, offset = 0x4, fixed_abs, tag = 'smem constant byte address 0x4 - core index']
  #allocation1 [shape = 'u32[144,128]{1,0:T(1,128)}', space=vmem, size = 0x12000, scoped, tag = 'internal scratch']
  #allocation2 [shape = 'f32[1]{0:T(128)S(6)}', space=smem, size = 0x200, scoped, tag = 'scoped memory for tpu_custom_call.1']
  %s0 = inlined_call_operand.vmem [shape: f32[2,64,256], index: 0, kind: input, shape index: {}]
  %s1 = inlined_call_operand.vmem [shape: f32[2,64,16], index: 1, kind: input, shape index: {}]
  %s2 = inlined_call_operand.hbm [shape: f32[16,256], index: 2, kind: input, shape index: {}]
  %s3 = inlined_call_operand.vmem [shape: bf16[256,144], index: 3, kind: input, shape index: {}]
  %s4 = inlined_call_operand.vmem [shape: f32[64,4], index: 4, kind: input, shape index: {}]
  %s5 = inlined_call_operand.<no memory space> [shape: f32[1], index: 5, kind: input, shape index: {}]
  %s6 = inlined_call_operand.vmem [shape: bf16[64,576], index: 6, kind: input, shape index: {}]
  %s7 = inlined_call_operand.vmem [shape: f32[64,64], index: 7, kind: input, shape index: {}]
  %s8 = inlined_call_operand.hbm [shape: f32[2,64,256], index: 8, kind: output, shape index: {0}]
  %s9 = inlined_call_operand.vmem [shape: f32[2,64,16], index: 9, kind: output, shape index: {1}]
  %10 = xla_tuple %s8, %s9
  %s11 = sld [smem:[#allocation0]]
  $region77: #{tpu_custom_call.1} parent=0
    _
  %s13 = ssub.s32 1, %s11
  %s14 = scalar_select 0, %s13, %s11
  %15 = sst [smem:[#allocation2]] %s5
  $region1: #{tpu_custom_call.1} parent=0
    #allocation3 [shape = 'u8[16384]{0}', space=vmem, size = 0x4000, scoped, tag = 'input window, operand 2, single buffered']
    #allocation4 [shape = 's32[2]{0}', space=sflag, size = 0x8, scoped, tag = 'scoped memory for tpu_custom_call.1']
    #allocation5 [shape = 's32[2]{0}', space=sflag, size = 0x8, scoped, tag = 'scoped memory for tpu_custom_call.1']
    #allocation6 [shape = 'u8[131072]{0}', space=vmem, size = 0x20000, scoped, tag = 'output window, operand 0']
    %16 = vsyncpa [#allocation4], 0
    %17 = vsyncpa [#allocation5], 0
    %s18 = scalar_lea.sflag [#allocation5], 1
    %19 = vsyncpa %s18, 0
    loop: start=0, step=1, limit=4
    $region2: #{tpu_custom_call.1} parent=1 // loop_pre_header
      _
    $region3: #{tpu_custom_call.1} parent=1 // loop_header
      %s21 = sphi 0, %s25
      %p22 = scmp.ge.s32.totalorder %s21, 4
      %s31 = sphi 0, %s33
      %s34 = sphi 0, %s31
      %s35 = sphi 0, %s34
      %s51 = sphi 0, %s35
      %s57 = sphi 0, %s59
      %s60 = sphi 0, %s57
      %s61 = sphi 0, %s60
      %s77 = sphi 0, %s61
      %s81 = sphi 0, %s81
      %s83 = sphi 0, %s81
      %s84 = sphi 0, %s83
      %s98 = sphi 0, %s84
      %s102 = sphi 0, %s102
      %s104 = sphi 0, %s102
      %s105 = sphi 0, %s104
      %s119 = sphi 0, %s105
      %s123 = sphi 0, %s123
      %s125 = sphi 0, %s123
      %s126 = sphi 0, %s125
      %s140 = sphi 0, %s126
      %s144 = sphi 0, %s144
      %s146 = sphi 0, %s144
      %s147 = sphi 0, %s146
      %s161 = sphi 0, %s147
      %s165 = sphi 0, %s165
      %s167 = sphi 0, %s165
      %s168 = sphi 0, %s167
      %s182 = sphi 0, %s168
      %s186 = sphi 0, %s186
      %s188 = sphi 0, %s186
      %s189 = sphi 0, %s188
      %s203 = sphi 0, %s189
      %s209 = sphi 0, %s211
      %s212 = sphi 0, %s209
      %s213 = sphi 0, %s212
      %s229 = sphi 0, %s213
      %s235 = sphi 0, %s237
      %s238 = sphi 0, %s235
      %s239 = sphi 0, %s238
      %s255 = sphi 0, %s239
    $region4: #{tpu_custom_call.1} parent=1 // loop_header_branch
      %24 = sbr.rel (%p22) target = $region8
    $region5: #{tpu_custom_call.1} parent=1 // loop_body
      %s26 = ssub.s32 %s21, 1
      %s27 = ssub.s32 %s21, 2
      %s28 = sadd.s32 %s21, 1
      %s29 = ssub.s32 %s21, %s28
      %p30 = scmp.eq.s32.totalorder %s29, 0
      %s32 = sadd.s32 %s31, 1
      %s33 = scalar_select %p30, %s31, %s32
      %p36 = pneg %p30
      %p37 = scmp.eq.s32.totalorder %s21, 1
      %p38 = por %p36, %p37
      %p39 = scmp.ne.s32.totalorder %s31, %s34
      %p40 = scmp.eq.s32.totalorder %s21, 0
      %p41 = por %p39, %p40
      %p42 = scmp.ne.s32.totalorder %s31, %s34
      %p43 = scmp.eq.s32.totalorder %s26, 1
      %p44 = por %p42, %p43
      %p45 = scmp.ne.s32.totalorder %s34, %s35
      %p46 = scmp.eq.s32.totalorder %s26, 0
      %p47 = por %p45, %p46
      %p48 = scmp.ne.s32.totalorder %s34, %s35
      %p49 = scmp.eq.s32.totalorder %s27, 1
      %p50 = por %p48, %p49
      %p52 = scmp.ne.s32.totalorder %s35, %s51
      %p53 = scmp.eq.s32.totalorder %s27, 0
      %p54 = por %p52, %p53
      %s55 = ssub.s32 %s21, %s28
      %p56 = scmp.eq.s32.totalorder %s55, 0
      %s58 = sadd.s32 %s57, 1
      %s59 = scalar_select %p56, %s57, %s58
      %p62 = pneg %p56
      %p63 = scmp.eq.s32.totalorder %s21, 1
      %p64 = por %p62, %p63
      %p65 = scmp.ne.s32.totalorder %s57, %s60
      %p66 = scmp.eq.s32.totalorder %s21, 0
      %p67 = por %p65, %p66
      %p68 = scmp.ne.s32.totalorder %s57, %s60
      %p69 = scmp.eq.s32.totalorder %s26, 1
      %p70 = por %p68, %p69
      %p71 = scmp.ne.s32.totalorder %s60, %s61
      %p72 = scmp.eq.s32.totalorder %s26, 0
      %p73 = por %p71, %p72
      %p74 = scmp.ne.s32.totalorder %s60, %s61
      %p75 = scmp.eq.s32.totalorder %s27, 1
      %p76 = por %p74, %p75
      %p78 = scmp.ne.s32.totalorder %s61, %s77
      %p79 = scmp.eq.s32.totalorder %s27, 0
      %p80 = por %p78, %p79
      %s82 = sadd.s32 %s81, 1
      %p85 = scmp.eq.s32.totalorder %s21, 1
      %p86 = scmp.ne.s32.totalorder %s81, %s83
      %p87 = scmp.eq.s32.totalorder %s21, 0
      %p88 = por %p86, %p87
      %p89 = scmp.ne.s32.totalorder %s81, %s83
      %p90 = scmp.eq.s32.totalorder %s26, 1
      %p91 = por %p89, %p90
      %p92 = scmp.ne.s32.totalorder %s83, %s84
      %p93 = scmp.eq.s32.totalorder %s26, 0
      %p94 = por %p92, %p93
      %p95 = scmp.ne.s32.totalorder %s83, %s84
      %p96 = scmp.eq.s32.totalorder %s27, 1
      %p97 = por %p95, %p96
      %p99 = scmp.ne.s32.totalorder %s84, %s98
      %p100 = scmp.eq.s32.totalorder %s27, 0
      %p101 = por %p99, %p100
      %s103 = sadd.s32 %s102, 1
      %p106 = scmp.eq.s32.totalorder %s21, 1
      %p107 = scmp.ne.s32.totalorder %s102, %s104
      %p108 = scmp.eq.s32.totalorder %s21, 0
      %p109 = por %p107, %p108
      %p110 = scmp.ne.s32.totalorder %s102, %s104
      %p111 = scmp.eq.s32.totalorder %s26, 1
      %p112 = por %p110, %p111
      %p113 = scmp.ne.s32.totalorder %s104, %s105
      %p114 = scmp.eq.s32.totalorder %s26, 0
      %p115 = por %p113, %p114
      %p116 = scmp.ne.s32.totalorder %s104, %s105
      %p117 = scmp.eq.s32.totalorder %s27, 1
      %p118 = por %p116, %p117
      %p120 = scmp.ne.s32.totalorder %s105, %s119
      %p121 = scmp.eq.s32.totalorder %s27, 0
      %p122 = por %p120, %p121
      %s124 = sadd.s32 %s123, 1
      %p127 = scmp.eq.s32.totalorder %s21, 1
      %p128 = scmp.ne.s32.totalorder %s123, %s125
      %p129 = scmp.eq.s32.totalorder %s21, 0
      %p130 = por %p128, %p129
      %p131 = scmp.ne.s32.totalorder %s123, %s125
      %p132 = scmp.eq.s32.totalorder %s26, 1
      %p133 = por %p131, %p132
      %p134 = scmp.ne.s32.totalorder %s125, %s126
      %p135 = scmp.eq.s32.totalorder %s26, 0
      %p136 = por %p134, %p135
      %p137 = scmp.ne.s32.totalorder %s125, %s126
      %p138 = scmp.eq.s32.totalorder %s27, 1
      %p139 = por %p137, %p138
      %p141 = scmp.ne.s32.totalorder %s126, %s140
      %p142 = scmp.eq.s32.totalorder %s27, 0
      %p143 = por %p141, %p142
      %s145 = sadd.s32 %s144, 1
      %p148 = scmp.eq.s32.totalorder %s21, 1
      %p149 = scmp.ne.s32.totalorder %s144, %s146
      %p150 = scmp.eq.s32.totalorder %s21, 0
      %p151 = por %p149, %p150
      %p152 = scmp.ne.s32.totalorder %s144, %s146
      %p153 = scmp.eq.s32.totalorder %s26, 1
      %p154 = por %p152, %p153
      %p155 = scmp.ne.s32.totalorder %s146, %s147
      %p156 = scmp.eq.s32.totalorder %s26, 0
      %p157 = por %p155, %p156
      %p158 = scmp.ne.s32.totalorder %s146, %s147
      %p159 = scmp.eq.s32.totalorder %s27, 1
      %p160 = por %p158, %p159
      %p162 = scmp.ne.s32.totalorder %s147, %s161
      %p163 = scmp.eq.s32.totalorder %s27, 0
      %p164 = por %p162, %p163
      %s166 = sadd.s32 %s165, 1
      %p169 = scmp.eq.s32.totalorder %s21, 1
      %p170 = scmp.ne.s32.totalorder %s165, %s167
      %p171 = scmp.eq.s32.totalorder %s21, 0
      %p172 = por %p170, %p171
      %p173 = scmp.ne.s32.totalorder %s165, %s167
      %p174 = scmp.eq.s32.totalorder %s26, 1
      %p175 = por %p173, %p174
      %p176 = scmp.ne.s32.totalorder %s167, %s168
      %p177 = scmp.eq.s32.totalorder %s26, 0
      %p178 = por %p176, %p177
      %p179 = scmp.ne.s32.totalorder %s167, %s168
      %p180 = scmp.eq.s32.totalorder %s27, 1
      %p181 = por %p179, %p180
      %p183 = scmp.ne.s32.totalorder %s168, %s182
      %p184 = scmp.eq.s32.totalorder %s27, 0
      %p185 = por %p183, %p184
      %s187 = sadd.s32 %s186, 1
      %p190 = scmp.eq.s32.totalorder %s21, 1
      %p191 = scmp.ne.s32.totalorder %s186, %s188
      %p192 = scmp.eq.s32.totalorder %s21, 0
      %p193 = por %p191, %p192
      %p194 = scmp.ne.s32.totalorder %s186, %s188
      %p195 = scmp.eq.s32.totalorder %s26, 1
      %p196 = por %p194, %p195
      %p197 = scmp.ne.s32.totalorder %s188, %s189
      %p198 = scmp.eq.s32.totalorder %s26, 0
      %p199 = por %p197, %p198
      %p200 = scmp.ne.s32.totalorder %s188, %s189
      %p201 = scmp.eq.s32.totalorder %s27, 1
      %p202 = por %p200, %p201
      %p204 = scmp.ne.s32.totalorder %s189, %s203
      %p205 = scmp.eq.s32.totalorder %s27, 0
      %p206 = por %p204, %p205
      %s207 = ssub.s32 %s21, %s28
      %p208 = scmp.eq.s32.totalorder %s207, 0
      %s210 = sadd.s32 %s209, 1
      %s211 = scalar_select %p208, %s209, %s210
      %p214 = pneg %p208
      %p215 = scmp.eq.s32.totalorder %s21, 1
      %p216 = por %p214, %p215
      %p217 = scmp.ne.s32.totalorder %s209, %s212
      %p218 = scmp.eq.s32.totalorder %s21, 0
      %p219 = por %p217, %p218
      %p220 = scmp.ne.s32.totalorder %s209, %s212
      %p221 = scmp.eq.s32.totalorder %s26, 1
      %p222 = por %p220, %p221
      %p223 = scmp.ne.s32.totalorder %s212, %s213
      %p224 = scmp.eq.s32.totalorder %s26, 0
      %p225 = por %p223, %p224
      %p226 = scmp.ne.s32.totalorder %s212, %s213
      %p227 = scmp.eq.s32.totalorder %s27, 1
      %p228 = por %p226, %p227
      %p230 = scmp.ne.s32.totalorder %s213, %s229
      %p231 = scmp.eq.s32.totalorder %s27, 0
      %p232 = por %p230, %p231
      %s233 = ssub.s32 %s21, %s28
      %p234 = scmp.eq.s32.totalorder %s233, 0
      %s236 = sadd.s32 %s235, 1
      %s237 = scalar_select %p234, %s235, %s236
      %p240 = pneg %p234
      %p241 = scmp.eq.s32.totalorder %s21, 1
      %p242 = por %p240, %p241
      %p243 = scmp.ne.s32.totalorder %s235, %s238
      %p244 = scmp.eq.s32.totalorder %s21, 0
      %p245 = por %p243, %p244
      %p246 = scmp.ne.s32.totalorder %s235, %s238
      %p247 = scmp.eq.s32.totalorder %s26, 1
      %p248 = por %p246, %p247
      %p249 = scmp.ne.s32.totalorder %s238, %s239
      %p250 = scmp.eq.s32.totalorder %s26, 0
      %p251 = por %p249, %p250
      %p252 = scmp.ne.s32.totalorder %s238, %s239
      %p253 = scmp.eq.s32.totalorder %s27, 1
      %p254 = por %p252, %p253
      %p256 = scmp.ne.s32.totalorder %s239, %s255
      %p257 = scmp.eq.s32.totalorder %s27, 0
      %p258 = por %p256, %p257
      %p259 = scmp.le.s32.totalorder 1, %s21
      %p260 = scmp.lt.s32.totalorder %s21, 3
      %p261 = pnand %p259, %p260
      %p262 = pneg %p261
      // Predicated region
      $region9: #{tpu_custom_call.1} parent=5 // pred_check
        _
      $region10: #{tpu_custom_call.1} parent=5 // pred_check_branch
        %264 = sbr.rel (%p261) target = $region12
      $region11: #{tpu_custom_call.1} parent=5 // pred_region
        %s265 = ssub.s32 %s21, 1
        // Predicated region
        $region13: #{tpu_custom_call.1} parent=11 // pred_check
          %p266 = pneg %p94
        $region14: #{tpu_custom_call.1} parent=11 // pred_check_branch
          %268 = sbr.rel (%p266) target = $region16
        $region15: #{tpu_custom_call.1} parent=11 // pred_region
          %s270 = ssub.s32 512, 512
          %271 = vsyncadd [#allocation4], %s270
          %s272 = sshll.u32 [#allocation3], 4
          %s273 = int_to_ptr.vmem [resolvable:$true] %s272
          %278 = dma.hbm_to_vmem [thread:$0]  %s2, 512, %s273, [#allocation4], 256, 256, 16
        $region16: #{tpu_custom_call.1} parent=11 // pred_fallthru
          _
        // Predicated region
        $region17: #{tpu_custom_call.1} parent=11 // pred_check
          %p279 = pneg %p115
        $region18: #{tpu_custom_call.1} parent=11 // pred_check_branch
          %281 = sbr.rel (%p279) target = $region20
        $region19: #{tpu_custom_call.1} parent=11 // pred_region
          _
        $region20: #{tpu_custom_call.1} parent=11 // pred_fallthru
          _
        // Predicated region
        $region21: #{tpu_custom_call.1} parent=11 // pred_check
          %p282 = pneg %p136
        $region22: #{tpu_custom_call.1} parent=11 // pred_check_branch
          %284 = sbr.rel (%p282) target = $region24
        $region23: #{tpu_custom_call.1} parent=11 // pred_region
          _
        $region24: #{tpu_custom_call.1} parent=11 // pred_fallthru
          _
        // Predicated region
        $region25: #{tpu_custom_call.1} parent=11 // pred_check
          %p285 = pneg %p157
        $region26: #{tpu_custom_call.1} parent=11 // pred_check_branch
          %287 = sbr.rel (%p285) target = $region28
        $region27: #{tpu_custom_call.1} parent=11 // pred_region
          _
        $region28: #{tpu_custom_call.1} parent=11 // pred_fallthru
          _
        // Predicated region
        $region29: #{tpu_custom_call.1} parent=11 // pred_check
          %p288 = pneg %p178
        $region30: #{tpu_custom_call.1} parent=11 // pred_check_branch
          %290 = sbr.rel (%p288) target = $region32
        $region31: #{tpu_custom_call.1} parent=11 // pred_region
          _
        $region32: #{tpu_custom_call.1} parent=11 // pred_fallthru
          _
        // Predicated region
        $region33: #{tpu_custom_call.1} parent=11 // pred_check
          %p291 = pneg %p199
        $region34: #{tpu_custom_call.1} parent=11 // pred_check_branch
          %293 = sbr.rel (%p291) target = $region36
        $region35: #{tpu_custom_call.1} parent=11 // pred_region
          _
        $region36: #{tpu_custom_call.1} parent=11 // pred_fallthru
          _
      $region12: #{tpu_custom_call.1} parent=5 // pred_fallthru
        _
      %p294 = scmp.lt.s32.totalorder %s21, 2
      // Predicated region
      $region37: #{tpu_custom_call.1} parent=5 // pred_check
        %p295 = pneg %p294
      $region38: #{tpu_custom_call.1} parent=5 // pred_check_branch
        %297 = sbr.rel (%p295) target = $region40
      $region39: #{tpu_custom_call.1} parent=5 // pred_region
        // Predicated region
        $region41: #{tpu_custom_call.1} parent=39 // pred_check
          %p298 = pneg %p41
        $region42: #{tpu_custom_call.1} parent=39 // pred_check_branch
          %300 = sbr.rel (%p298) target = $region44
        $region43: #{tpu_custom_call.1} parent=39 // pred_region
          %p301 = scmp.lt.s32.totalorder %s21, 1
          %s302 = scalar_select %p301, %s21, 1
          %s303 = smul.addr %s302, 16
          %s304 = smul.addr %s303, 8
          %s305 = scalar_lea.vmem %s0, %s304
        $region44: #{tpu_custom_call.1} parent=39 // pred_fallthru
          _
        // Predicated region
        $region45: #{tpu_custom_call.1} parent=39 // pred_check
          %p306 = pneg %p67
        $region46: #{tpu_custom_call.1} parent=39 // pred_check_branch
          %308 = sbr.rel (%p306) target = $region48
        $region47: #{tpu_custom_call.1} parent=39 // pred_region
          %p309 = scmp.lt.s32.totalorder %s21, 1
          %s310 = scalar_select %p309, %s21, 1
          %s311 = smul.addr %s310, 8
          %s312 = smul.addr %s311, 8
          %s313 = scalar_lea.vmem %s1, %s312
        $region48: #{tpu_custom_call.1} parent=39 // pred_fallthru
          _
      $region40: #{tpu_custom_call.1} parent=5 // pred_fallthru
        _
      %p314 = scmp.le.s32.totalorder 1, %s21
      %p315 = scmp.lt.s32.totalorder %s21, 3
      %p316 = pnand %p314, %p315
      %p317 = pneg %p316
      // Predicated region
      $region49: #{tpu_custom_call.1} parent=5 // pred_check
        _
      $region50: #{tpu_custom_call.1} parent=5 // pred_check_branch
        %319 = sbr.rel (%p316) target = $region52
      $region51: #{tpu_custom_call.1} parent=5 // pred_region
        %s320 = ssub.s32 %s21, 1
        // Predicated region
        $region53: #{tpu_custom_call.1} parent=51 // pred_check
          %p321 = pneg %p94
        $region54: #{tpu_custom_call.1} parent=51 // pred_check_branch
          %323 = sbr.rel (%p321) target = $region56
        $region55: #{tpu_custom_call.1} parent=51 // pred_region
          %324 = dma.done [#allocation4], 512
        $region56: #{tpu_custom_call.1} parent=51 // pred_fallthru
          _
        %p325 = scmp.lt.s32.totalorder %s26, 1
        %s326 = scalar_select %p325, %s26, 1
        %s327 = smul.addr %s326, 16
        %s328 = smul.addr %s327, 8
        %s329 = scalar_lea.vmem %s0, %s328
        %p330 = pneg %p47
        %p331 = pneg %p44
        %p332 = scmp.lt.s32.totalorder %s26, 1
        %s333 = scalar_select %p332, %s26, 1
        %s334 = smul.addr %s333, 8
        %s335 = smul.addr %s334, 8
        %s336 = scalar_lea.vmem %s1, %s335
        %p337 = pneg %p73
        %p338 = pneg %p70
        %p339 = pneg %p94
        %p340 = pneg %p91
        %p341 = pneg %p115
        %p342 = pneg %p112
        %p343 = pneg %p136
        %p344 = pneg %p133
        %p345 = pneg %p157
        %p346 = pneg %p154
        %p347 = pneg %p178
        %p348 = pneg %p175
        %p349 = pneg %p199
        %p350 = pneg %p196
        %p351 = pneg %p225
        %p352 = pneg %p222
        %s353 = sand.u32 %s212, 1
        %s354 = scalar_lea.sflag [#allocation5], %s353
        %s355 = sand.u32 %s212, 1
        %s356 = smul.addr %s355, 128
        %s357 = scalar_lea.vmem [#allocation6], %s356
        %p358 = pneg %p251
        %p359 = pneg %p248
        %p360 = scmp.lt.s32.totalorder %s26, 1
        %s361 = scalar_select %p360, %s26, 1
        %s362 = smul.addr %s361, 8
        %s363 = smul.addr %s362, 8
        %s364 = scalar_lea.vmem %s9, %s363
        %p365 = scmp.lt.s32.totalorder %s26, 1
        %s366 = scalar_select %p365, %s26, 1
        %s367 = smul.addr %s366, 16
        %s368 = smul.addr %s367, 8
        %s369 = scalar_lea.vmem %s0, %s368
        %p370 = scmp.lt.s32.totalorder %s26, 1
        %s371 = scalar_select %p370, %s26, 1
        %s372 = smul.addr %s371, 8
        %s373 = smul.addr %s372, 8
        %s374 = scalar_lea.vmem %s1, %s373
        %p375 = scmp.lt.s32.totalorder %s26, 1
        %s376 = scalar_select %p375, %s26, 1
        %s377 = smul.addr %s376, 8
        %s378 = smul.addr %s377, 8
        %s379 = scalar_lea.vmem %s9, %s378
        %v381 = vld [vmem:[%s369] sm:$0xff]
        %v382 = vld [vmem:[%s369 + $0x8] sm:$0xff]
        %v383 = vld [vmem:[%s369 + $0x10] sm:$0xff]
        %v384 = vld [vmem:[%s369 + $0x18] sm:$0xff]
        %v385 = vld [vmem:[%s369 + $0x20] sm:$0xff]
        %v386 = vld [vmem:[%s369 + $0x28] sm:$0xff]
        %v387 = vld [vmem:[%s369 + $0x30] sm:$0xff]
        %v388 = vld [vmem:[%s369 + $0x38] sm:$0xff]
        %v389 = vld [vmem:[%s369 + $0x40] sm:$0xff]
        %v390 = vld [vmem:[%s369 + $0x48] sm:$0xff]
        %v391 = vld [vmem:[%s369 + $0x50] sm:$0xff]
        %v392 = vld [vmem:[%s369 + $0x58] sm:$0xff]
        %v393 = vld [vmem:[%s369 + $0x60] sm:$0xff]
        %v394 = vld [vmem:[%s369 + $0x68] sm:$0xff]
        %v395 = vld [vmem:[%s369 + $0x70] sm:$0xff]
        %v396 = vld [vmem:[%s369 + $0x78] sm:$0xff]
        %v397 = vld [vmem:[%s374] sm:$0xff]
        %v398 = vld [vmem:[%s374 + $0x8] sm:$0xff]
        %v399 = vld [vmem:[%s374 + $0x10] sm:$0xff]
        %v400 = vld [vmem:[%s374 + $0x18] sm:$0xff]
        %v401 = vld [vmem:[%s374 + $0x20] sm:$0xff]
        %v402 = vld [vmem:[%s374 + $0x28] sm:$0xff]
        %v403 = vld [vmem:[%s374 + $0x30] sm:$0xff]
        %v404 = vld [vmem:[%s374 + $0x38] sm:$0xff]
        %v405 = vld [vmem:[%s4] sm:$0xff]
        %v406 = vld [vmem:[%s4 + $0x8] sm:$0xff]
        %v407 = vld [vmem:[%s4 + $0x10] sm:$0xff]
        %v408 = vld [vmem:[%s4 + $0x18] sm:$0xff]
        %v409 = vld [vmem:[%s4 + $0x20] sm:$0xff]
        %v410 = vld [vmem:[%s4 + $0x28] sm:$0xff]
        %v411 = vld [vmem:[%s4 + $0x30] sm:$0xff]
        %v412 = vld [vmem:[%s4 + $0x38] sm:$0xff]
        %v413 = vld [vmem:[#allocation3] sm:$0xff]
        %v414 = vld [vmem:[#allocation3 + $0x8] sm:$0xff]
        %v415 = vld [vmem:[#allocation3 + $0x10] sm:$0xff]
        %v416 = vld [vmem:[#allocation3 + $0x18] sm:$0xff]
        %vm417 = vcmask 130048
        %v419 = vsel %vm417, %v397, 0
        %v422 = vsel %vm417, %v398, 0
        %v425 = vsel %vm417, %v399, 0
        %v428 = vsel %vm417, %v400, 0
        %v431 = vsel %vm417, %v401, 0
        %v434 = vsel %vm417, %v402, 0
        %v437 = vsel %vm417, %v403, 0
        %v440 = vsel %vm417, %v404, 0
        %442 = vmatprep.subr.mxu0 %v414
        %443 = vmatpush1.msra.mxu0 %v413
        %444 = vmatprep.subr.mxu0 %v416
        %445 = vmatpush1.msra.mxu0 %v415
        %446 = vmatprep.subr.mxu0 0.0
        %447 = vmatpush1.msra.mxu0 0.0
        %448 = vmatprep.subr.mxu0 0.0
        %449 = vmatpush1.msra.mxu0 0.0
        %450 = vmatprep.subr.mxu0 0.0
        %451 = vmatpush1.msra.mxu0 0.0
        %452 = vmatprep.subr.mxu0 0.0
        %453 = vmatpush1.msra.mxu0 0.0
        %454 = vmatprep.subr.mxu0 0.0
        %455 = vmatpush1.msra.mxu0 0.0
        %456 = vmatprep.subr.mxu0 0.0
        %457 = vmatpush1.msra.mxu0 0.0
        %458 = vmatprep.subr.mxu0 0.0
        %459 = vmatpush1.msra.mxu0 0.0
        %460 = vmatprep.subr.mxu0 0.0
        %461 = vmatpush1.msra.mxu0 0.0
        %462 = vmatprep.subr.mxu0 0.0
        %463 = vmatpush1.msra.mxu0 0.0
        %464 = vmatprep.subr.mxu0 0.0
        %465 = vmatpush1.msra.mxu0 0.0
        %466 = vmatprep.subr.mxu0 0.0
        %467 = vmatpush1.msra.mxu0 0.0
        %468 = vmatprep.subr.mxu0 0.0
        %469 = vmatpush1.msra.mxu0 0.0
        %470 = vmatprep.subr.mxu0 0.0
        %471 = vmatpush1.msra.mxu0 0.0
        %472 = vmatprep.subr.mxu0 0.0
        %473 = vmatpush1.msra.mxu0 0.0
        %474 = vmatprep.subr.mxu0 0.0
        %475 = vmatpush1.msra.mxu0 0.0
        %476 = vmatprep.subr.mxu0 0.0
        %477 = vmatpush1.msra.mxu0 0.0
        %478 = vmatprep.subr.mxu0 0.0
        %479 = vmatpush1.msra.mxu0 0.0
        %480 = vmatprep.subr.mxu0 0.0
        %481 = vmatpush1.msra.mxu0 0.0
        %482 = vmatprep.subr.mxu0 0.0
        %483 = vmatpush1.msra.mxu0 0.0
        %484 = vmatprep.subr.mxu0 0.0
        %485 = vmatpush1.msra.mxu0 0.0
        %486 = vmatprep.subr.mxu0 0.0
        %487 = vmatpush1.msra.mxu0 0.0
        %488 = vmatprep.subr.mxu0 0.0
        %489 = vmatpush1.msra.mxu0 0.0
        %490 = vmatprep.subr.mxu0 0.0
        %491 = vmatpush1.msra.mxu0 0.0
        %492 = vmatprep.subr.mxu0 0.0
        %493 = vmatpush1.msra.mxu0 0.0
        %494 = vmatprep.subr.mxu0 0.0
        %495 = vmatpush1.msra.mxu0 0.0
        %496 = vmatprep.subr.mxu0 0.0
        %497 = vmatpush1.msra.mxu0 0.0
        %498 = vmatprep.subr.mxu0 0.0
        %499 = vmatpush1.msra.mxu0 0.0
        %500 = vmatprep.subr.mxu0 0.0
        %501 = vmatpush1.msra.mxu0 0.0
        %502 = vmatprep.subr.mxu0 0.0
        %503 = vmatpush1.msra.mxu0 0.0
        %504 = vmatprep.subr.mxu0 0.0
        %505 = vmatpush1.msra.mxu0 0.0
        %506 = vmatprep.mubr.f32.mxu0 0.0
        %507 = vmatmul.mubr.f32.gmra.mrb[0].mxu0 %v419
        %v508 = vpop.f32.mrb[0].mxu0
        %v509 = vadd.f32 0.0, %v508
        %v510 = vpop.f32.mrb[0].mxu0
        %v511 = vadd.f32 0.0, %v510
        %512 = vmatprep.mubr.f32.mxu0 0.0
        %513 = vmatmul.mubr.f32.gmra.mrb[0].mxu0 %v422
        %v514 = vpop.f32.mrb[0].mxu0
        %v515 = vadd.f32 0.0, %v514
        %v516 = vpop.f32.mrb[0].mxu0
        %v517 = vadd.f32 0.0, %v516
        %518 = vmatprep.mubr.f32.mxu0 0.0
        %519 = vmatmul.mubr.f32.gmra.mrb[0].mxu0 %v425
        %v520 = vpop.f32.mrb[0].mxu0
        %v521 = vadd.f32 0.0, %v520
        %v522 = vpop.f32.mrb[0].mxu0
        %v523 = vadd.f32 0.0, %v522
        %524 = vmatprep.mubr.f32.mxu0 0.0
        %525 = vmatmul.mubr.f32.gmra.mrb[0].mxu0 %v428
        %v526 = vpop.f32.mrb[0].mxu0
        %v527 = vadd.f32 0.0, %v526
        %v528 = vpop.f32.mrb[0].mxu0
        %v529 = vadd.f32 0.0, %v528
        %530 = vmatprep.mubr.f32.mxu0 0.0
        %531 = vmatmul.mubr.f32.gmra.mrb[0].mxu0 %v431
        %v532 = vpop.f32.mrb[0].mxu0
        %v533 = vadd.f32 0.0, %v532
        %v534 = vpop.f32.mrb[0].mxu0
        %v535 = vadd.f32 0.0, %v534
        %536 = vmatprep.mubr.f32.mxu0 0.0
        %537 = vmatmul.mubr.f32.gmra.mrb[0].mxu0 %v434
        %v538 = vpop.f32.mrb[0].mxu0
        %v539 = vadd.f32 0.0, %v538
        %v540 = vpop.f32.mrb[0].mxu0
        %v541 = vadd.f32 0.0, %v540
        %542 = vmatprep.mubr.f32.mxu0 0.0
        %543 = vmatmul.mubr.f32.gmra.mrb[0].mxu0 %v437
        %v544 = vpop.f32.mrb[0].mxu0
        %v545 = vadd.f32 0.0, %v544
        %v546 = vpop.f32.mrb[0].mxu0
        %v547 = vadd.f32 0.0, %v546
        %548 = vmatprep.mubr.f32.mxu0 0.0
        %549 = vmatmul.mubr.f32.gmra.mrb[0].mxu0 %v440
        %v550 = vpop.f32.mrb[0].mxu0
        %v551 = vadd.f32 0.0, %v550
        %v552 = vpop.f32.mrb[0].mxu0
        %v553 = vadd.f32 0.0, %v552
        %554 = vdwg.mxu0
        %556 = vset.pattern.permute.xlu0 0
        %557 = vperm.xlu0 %556, %v405
        %v558 = vpop.permute.xlu0 %557
        %561 = vset.pattern.permute.xlu0 0
        %562 = vperm.xlu0 %561, %v406
        %v563 = vpop.permute.xlu0 %562
        %566 = vset.pattern.permute.xlu0 0
        %567 = vperm.xlu0 %566, %v407
        %v568 = vpop.permute.xlu0 %567
        %571 = vset.pattern.permute.xlu0 0
        %572 = vperm.xlu0 %571, %v408
        %v573 = vpop.permute.xlu0 %572
        %576 = vset.pattern.permute.xlu0 0
        %577 = vperm.xlu0 %576, %v409
        %v578 = vpop.permute.xlu0 %577
        %581 = vset.pattern.permute.xlu0 0
        %582 = vperm.xlu0 %581, %v410
        %v583 = vpop.permute.xlu0 %582
        %586 = vset.pattern.permute.xlu0 0
        %587 = vperm.xlu0 %586, %v411
        %v588 = vpop.permute.xlu0 %587
        %591 = vset.pattern.permute.xlu0 0
        %592 = vperm.xlu0 %591, %v412
        %v593 = vpop.permute.xlu0 %592
        %v595 = vmul.f32 %v558, %v509
        %v596 = vmul.f32 %v558, %v511
        %v597 = vmul.f32 %v563, %v515
        %v598 = vmul.f32 %v563, %v517
        %v599 = vmul.f32 %v568, %v521
        %v600 = vmul.f32 %v568, %v523
        %v601 = vmul.f32 %v573, %v527
        %v602 = vmul.f32 %v573, %v529
        %v603 = vmul.f32 %v578, %v533
        %v604 = vmul.f32 %v578, %v535
        %v605 = vmul.f32 %v583, %v539
        %v606 = vmul.f32 %v583, %v541
        %v607 = vmul.f32 %v588, %v545
        %v608 = vmul.f32 %v588, %v547
        %v609 = vmul.f32 %v593, %v551
        %v610 = vmul.f32 %v593, %v553
        %v611 = vadd.f32 %v595, %v597
        %v612 = vadd.f32 %v611, %v599
        %v613 = vadd.f32 %v612, %v601
        %v614 = vadd.f32 %v613, %v603
        %v615 = vadd.f32 %v614, %v605
        %v616 = vadd.f32 %v615, %v607
        %v617 = vadd.f32 %v616, %v609
        %v618 = vrot.slane %v617, 4
        %v619 = vadd.f32 %v617, %v618
        %v620 = vrot.slane %v619, 2
        %v621 = vadd.f32 %v619, %v620
        %v622 = vrot.slane %v621, 1
        %v623 = vadd.f32 %v621, %v622
        %v624 = vadd.f32 %v596, %v598
        %v625 = vadd.f32 %v624, %v600
        %v626 = vadd.f32 %v625, %v602
        %v627 = vadd.f32 %v626, %v604
        %v628 = vadd.f32 %v627, %v606
        %v629 = vadd.f32 %v628, %v608
        %v630 = vadd.f32 %v629, %v610
        %v631 = vrot.slane %v630, 4
        %v632 = vadd.f32 %v630, %v631
        %v633 = vrot.slane %v632, 2
        %v634 = vadd.f32 %v632, %v633
        %v635 = vrot.slane %v634, 1
        %v636 = vadd.f32 %v634, %v635
        %s637 = sld [smem:[#allocation2]]
        %v638 = vstv %s637
        %v639 = vadd.f32 %v623, %v638
        %v640 = vadd.f32 %v636, %v638
        %v641 = vxor.u32 %v639, 2147483648
        %v642 = vxor.u32 %v640, 2147483648
        %v643 = vmul.f32 %v641, 1.442695
        %v644 = vpow.pop %v643
        %v645 = vmul.f32 %v642, 1.442695
        %v646 = vpow.pop %v645
        %v647 = vadd.f32 %v644, 1.0
        %v648 = vadd.f32 %v646, 1.0
        %v649 = vrcp.pop %v647
        %v650 = vmul.f32 1.0, %v649
        %v651 = vrcp.pop %v648
        %v652 = vmul.f32 1.0, %v651
        %v653 = vmul.f32 %v381, %v650
        %v654 = vmul.f32 %v382, %v652
        %v655 = vmul.f32 %v383, %v650
        %v656 = vmul.f32 %v384, %v652
        %v657 = vmul.f32 %v385, %v650
        %v658 = vmul.f32 %v386, %v652
        %v659 = vmul.f32 %v387, %v650
        %v660 = vmul.f32 %v388, %v652
        %v661 = vmul.f32 %v389, %v650
        %v662 = vmul.f32 %v390, %v652
        %v663 = vmul.f32 %v391, %v650
        %v664 = vmul.f32 %v392, %v652
        %v665 = vmul.f32 %v393, %v650
        %v666 = vmul.f32 %v394, %v652
        %v667 = vmul.f32 %v395, %v650
        %v668 = vmul.f32 %v396, %v652
        %v669 = vsub.f32 1.0, %v650
        %v670 = vsub.f32 1.0, %v652
        %v671 = vmul.f32 %v381, %v669
        %v672 = vmul.f32 %v382, %v670
        %v673 = vmul.f32 %v383, %v669
        %v674 = vmul.f32 %v384, %v670
        %v675 = vmul.f32 %v385, %v669
        %v676 = vmul.f32 %v386, %v670
        %v677 = vmul.f32 %v387, %v669
        %v678 = vmul.f32 %v388, %v670
        %v679 = vmul.f32 %v389, %v669
        %v680 = vmul.f32 %v390, %v670
        %v681 = vmul.f32 %v391, %v669
        %v682 = vmul.f32 %v392, %v670
        %v683 = vmul.f32 %v393, %v669
        %v684 = vmul.f32 %v394, %v670
        %v685 = vmul.f32 %v395, %v669
        %v686 = vmul.f32 %v396, %v670
        %687 = vst [vmem:[%s357] sm:$0xff] %v671
        %688 = vst [vmem:[%s357 + $0x8] sm:$0xff] %v672
        %689 = vst [vmem:[%s357 + $0x10] sm:$0xff] %v673
        %690 = vst [vmem:[%s357 + $0x18] sm:$0xff] %v674
        %691 = vst [vmem:[%s357 + $0x20] sm:$0xff] %v675
        %692 = vst [vmem:[%s357 + $0x28] sm:$0xff] %v676
        %693 = vst [vmem:[%s357 + $0x30] sm:$0xff] %v677
        %694 = vst [vmem:[%s357 + $0x38] sm:$0xff] %v678
        %695 = vst [vmem:[%s357 + $0x40] sm:$0xff] %v679
        %696 = vst [vmem:[%s357 + $0x48] sm:$0xff] %v680
        %697 = vst [vmem:[%s357 + $0x50] sm:$0xff] %v681
        %698 = vst [vmem:[%s357 + $0x58] sm:$0xff] %v682
        %699 = vst [vmem:[%s357 + $0x60] sm:$0xff] %v683
        %700 = vst [vmem:[%s357 + $0x68] sm:$0xff] %v684
        %701 = vst [vmem:[%s357 + $0x70] sm:$0xff] %v685
        %702 = vst [vmem:[%s357 + $0x78] sm:$0xff] %v686
        %v703 = vpack.c.bf16 %v655, %v653
        %v704 = vpack.c.bf16 %v656, %v654
        %v705 = vpack.c.bf16 %v659, %v657
        %v706 = vpack.c.bf16 %v660, %v658
        %v707 = vpack.c.bf16 %v663, %v661
        %v708 = vpack.c.bf16 %v664, %v662
        %v709 = vpack.c.bf16 %v667, %v665
        %v710 = vpack.c.bf16 %v668, %v666
        %v711 = vld [vmem:[%s3] sm:$0xff]
        %v712 = vld [vmem:[%s3 + $0x8] sm:$0xff]
        %v713 = vld [vmem:[%s3 + $0x10] sm:$0xff]
        %v714 = vld [vmem:[%s3 + $0x18] sm:$0xff]
        %v715 = vld [vmem:[%s3 + $0x20] sm:$0xff]
        %v716 = vld [vmem:[%s3 + $0x28] sm:$0xff]
        %v717 = vld [vmem:[%s3 + $0x30] sm:$0xff]
        %v718 = vld [vmem:[%s3 + $0x38] sm:$0xff]
        %v719 = vld [vmem:[%s3 + $0x40] sm:$0xff]
        %v720 = vld [vmem:[%s3 + $0x48] sm:$0xff]
        %v721 = vld [vmem:[%s3 + $0x50] sm:$0xff]
        %v722 = vld [vmem:[%s3 + $0x58] sm:$0xff]
        %v723 = vld [vmem:[%s3 + $0x60] sm:$0xff]
        %v724 = vld [vmem:[%s3 + $0x68] sm:$0xff]
        %v725 = vld [vmem:[%s3 + $0x70] sm:$0xff]
        %v726 = vld [vmem:[%s3 + $0x78] sm:$0xff]
        %v727 = vld [vmem:[%s3 + $0x80] sm:$0xff]
        %v728 = vld [vmem:[%s3 + $0x88] sm:$0xff]
        %v729 = vld [vmem:[%s3 + $0x90] sm:$0xff]
        %v730 = vld [vmem:[%s3 + $0x98] sm:$0xff]
        %v731 = vld [vmem:[%s3 + $0xa0] sm:$0xff]
        %v732 = vld [vmem:[%s3 + $0xa8] sm:$0xff]
        %v733 = vld [vmem:[%s3 + $0xb0] sm:$0xff]
        %v734 = vld [vmem:[%s3 + $0xb8] sm:$0xff]
        %v735 = vld [vmem:[%s3 + $0xc0] sm:$0xff]
        %v736 = vld [vmem:[%s3 + $0xc8] sm:$0xff]
        %v737 = vld [vmem:[%s3 + $0xd0] sm:$0xff]
        %v738 = vld [vmem:[%s3 + $0xd8] sm:$0xff]
        %v739 = vld [vmem:[%s3 + $0xe0] sm:$0xff]
        %v740 = vld [vmem:[%s3 + $0xe8] sm:$0xff]
        %v741 = vld [vmem:[%s3 + $0xf0] sm:$0xff]
        %v742 = vld [vmem:[%s3 + $0xf8] sm:$0xff]
        %v775 = vunpack.c.l.b16 %v711
        %v776 = vunpack.c.h.b16 %v711
        %v777 = vunpack.c.l.b16 %v712
        %v778 = vunpack.c.h.b16 %v712
        %v779 = vunpack.c.l.b16 %v713
        %v780 = vunpack.c.h.b16 %v713
        %v781 = vunpack.c.l.b16 %v714
        %v782 = vunpack.c.h.b16 %v714
        %v783 = vunpack.c.l.b16 %v715
        %v784 = vunpack.c.h.b16 %v715
        %v785 = vunpack.c.l.b16 %v716
        %v786 = vunpack.c.h.b16 %v716
        %v787 = vunpack.c.l.b16 %v717
        %v788 = vunpack.c.h.b16 %v717
        %v789 = vunpack.c.l.b16 %v718
        %v790 = vunpack.c.h.b16 %v718
        %v791 = vunpack.c.l.b16 %v719
        %v792 = vunpack.c.h.b16 %v719
        %v793 = vunpack.c.l.b16 %v720
        %v794 = vunpack.c.h.b16 %v720
        %v795 = vunpack.c.l.b16 %v721
        %v796 = vunpack.c.h.b16 %v721
        %v797 = vunpack.c.l.b16 %v722
        %v798 = vunpack.c.h.b16 %v722
        %v799 = vunpack.c.l.b16 %v723
        %v800 = vunpack.c.h.b16 %v723
        %v801 = vunpack.c.l.b16 %v724
        %v802 = vunpack.c.h.b16 %v724
        %v803 = vunpack.c.l.b16 %v725
        %v804 = vunpack.c.h.b16 %v725
        %v805 = vunpack.c.l.b16 %v726
        %v806 = vunpack.c.h.b16 %v726
        %v807 = vunpack.c.l.b16 %v727
        %v808 = vunpack.c.h.b16 %v727
        %v809 = vunpack.c.l.b16 %v728
        %v810 = vunpack.c.h.b16 %v728
        %v811 = vunpack.c.l.b16 %v729
        %v812 = vunpack.c.h.b16 %v729
        %v813 = vunpack.c.l.b16 %v730
        %v814 = vunpack.c.h.b16 %v730
        %v815 = vunpack.c.l.b16 %v731
        %v816 = vunpack.c.h.b16 %v731
        %v817 = vunpack.c.l.b16 %v732
        %v818 = vunpack.c.h.b16 %v732
        %v819 = vunpack.c.l.b16 %v733
        %v820 = vunpack.c.h.b16 %v733
        %v821 = vunpack.c.l.b16 %v734
        %v822 = vunpack.c.h.b16 %v734
        %v823 = vunpack.c.l.b16 %v735
        %v824 = vunpack.c.h.b16 %v735
        %v825 = vunpack.c.l.b16 %v736
        %v826 = vunpack.c.h.b16 %v736
        %v827 = vunpack.c.l.b16 %v737
        %v828 = vunpack.c.h.b16 %v737
        %v829 = vunpack.c.l.b16 %v738
        %v830 = vunpack.c.h.b16 %v738
        %v831 = vunpack.c.l.b16 %v739
        %v832 = vunpack.c.h.b16 %v739
        %v833 = vunpack.c.l.b16 %v740
        %v834 = vunpack.c.h.b16 %v740
        %v835 = vunpack.c.l.b16 %v741
        %v836 = vunpack.c.h.b16 %v741
        %v837 = vunpack.c.l.b16 %v742
        %v838 = vunpack.c.h.b16 %v742
        %v839 = vpack.c.b16 %v777, %v775
        %v840 = vpack.c.b16 %v778, %v776
        %v841 = vpack.c.b16 %v781, %v779
        %v842 = vpack.c.b16 %v782, %v780
        %v843 = vpack.c.b16 %v785, %v783
        %v844 = vpack.c.b16 %v786, %v784
        %v845 = vpack.c.b16 %v789, %v787
        %v846 = vpack.c.b16 %v790, %v788
        %v847 = vpack.c.b16 %v793, %v791
        %v848 = vpack.c.b16 %v794, %v792
        %v849 = vpack.c.b16 %v797, %v795
        %v850 = vpack.c.b16 %v798, %v796
        %v851 = vpack.c.b16 %v801, %v799
        %v852 = vpack.c.b16 %v802, %v800
        %v853 = vpack.c.b16 %v805, %v803
        %v854 = vpack.c.b16 %v806, %v804
        %v855 = vpack.c.b16 %v809, %v807
        %v856 = vpack.c.b16 %v810, %v808
        %v857 = vpack.c.b16 %v813, %v811
        %v858 = vpack.c.b16 %v814, %v812
        %v859 = vpack.c.b16 %v817, %v815
        %v860 = vpack.c.b16 %v818, %v816
        %v861 = vpack.c.b16 %v821, %v819
        %v862 = vpack.c.b16 %v822, %v820
        %v863 = vpack.c.b16 %v825, %v823
        %v864 = vpack.c.b16 %v826, %v824
        %v865 = vpack.c.b16 %v829, %v827
        %v866 = vpack.c.b16 %v830, %v828
        %v867 = vpack.c.b16 %v833, %v831
        %v868 = vpack.c.b16 %v834, %v832
        %v869 = vpack.c.b16 %v837, %v835
        %v870 = vpack.c.b16 %v838, %v836
        %903 = vmatprep.subr.bf16.mxu0 %v840
        %904 = vmatpush1.bf16.msra.mxu0 %v839
        %905 = vmatprep.subr.bf16.mxu0 %v842
        %906 = vmatpush1.bf16.msra.mxu0 %v841
        %907 = vmatprep.subr.bf16.mxu0 %v844
        %908 = vmatpush1.bf16.msra.mxu0 %v843
        %909 = vmatprep.subr.bf16.mxu0 %v846
        %910 = vmatpush1.bf16.msra.mxu0 %v845
        %911 = vmatprep.subr.bf16.mxu0 %v848
        %912 = vmatpush1.bf16.msra.mxu0 %v847
        %913 = vmatprep.subr.bf16.mxu0 %v850
        %914 = vmatpush1.bf16.msra.mxu0 %v849
        %915 = vmatprep.subr.bf16.mxu0 %v852
        %916 = vmatpush1.bf16.msra.mxu0 %v851
        %917 = vmatprep.subr.bf16.mxu0 %v854
        %918 = vmatpush1.bf16.msra.mxu0 %v853
        %919 = vmatprep.subr.bf16.mxu0 %v856
        %920 = vmatpush1.bf16.msra.mxu0 %v855
        %921 = vmatprep.subr.bf16.mxu0 %v858
        %922 = vmatpush1.bf16.msra.mxu0 %v857
        %923 = vmatprep.subr.bf16.mxu0 %v860
        %924 = vmatpush1.bf16.msra.mxu0 %v859
        %925 = vmatprep.subr.bf16.mxu0 %v862
        %926 = vmatpush1.bf16.msra.mxu0 %v861
        %927 = vmatprep.subr.bf16.mxu0 %v864
        %928 = vmatpush1.bf16.msra.mxu0 %v863
        %929 = vmatprep.subr.bf16.mxu0 %v866
        %930 = vmatpush1.bf16.msra.mxu0 %v865
        %931 = vmatprep.subr.bf16.mxu0 %v868
        %932 = vmatpush1.bf16.msra.mxu0 %v867
        %933 = vmatprep.subr.bf16.mxu0 %v870
        %934 = vmatpush1.bf16.msra.mxu0 %v869
        %935 = vmatprep.mubr.bf16.mxu0 %v704
        %936 = vmatmul.mubr.bf16.gmra.mrb[0].mxu0 %v703
        %v937 = vpop.f32.mrb[0].mxu0
        %v938 = vadd.f32 0.0, %v937
        %v939 = vpop.f32.mrb[0].mxu0
        %v940 = vadd.f32 0.0, %v939
        %v941 = vpop.f32.mrb[0].mxu0
        %v942 = vadd.f32 0.0, %v941
        %v943 = vpop.f32.mrb[0].mxu0
        %v944 = vadd.f32 0.0, %v943
        %945 = vmatprep.mubr.bf16.mxu0 %v706
        %946 = vmatmul.mubr.bf16.gmra.mrb[0].mxu0 %v705
        %v947 = vpop.f32.mrb[0].mxu0
        %v948 = vadd.f32 0.0, %v947
        %v949 = vpop.f32.mrb[0].mxu0
        %v950 = vadd.f32 0.0, %v949
        %v951 = vpop.f32.mrb[0].mxu0
        %v952 = vadd.f32 0.0, %v951
        %v953 = vpop.f32.mrb[0].mxu0
        %v954 = vadd.f32 0.0, %v953
        %955 = vmatprep.mubr.bf16.mxu0 %v708
        %956 = vmatmul.mubr.bf16.gmra.mrb[0].mxu0 %v707
        %v957 = vpop.f32.mrb[0].mxu0
        %v958 = vadd.f32 0.0, %v957
        %v959 = vpop.f32.mrb[0].mxu0
        %v960 = vadd.f32 0.0, %v959
        %v961 = vpop.f32.mrb[0].mxu0
        %v962 = vadd.f32 0.0, %v961
        %v963 = vpop.f32.mrb[0].mxu0
        %v964 = vadd.f32 0.0, %v963
        %965 = vmatprep.mubr.bf16.mxu0 %v710
        %966 = vmatmul.mubr.bf16.gmra.mrb[0].mxu0 %v709
        %v967 = vpop.f32.mrb[0].mxu0
        %v968 = vadd.f32 0.0, %v967
        %v969 = vpop.f32.mrb[0].mxu0
        %v970 = vadd.f32 0.0, %v969
        %v971 = vpop.f32.mrb[0].mxu0
        %v972 = vadd.f32 0.0, %v971
        %v973 = vpop.f32.mrb[0].mxu0
        %v974 = vadd.f32 0.0, %v973
        %975 = vdwg.mxu0
        %984 = vrot.lane.b32.xlu0 %v938, 112
        %v985 = vpop.permute.xlu0 %984
        %986 = vrot.lane.b32.xlu0 %v942, 112
        %v987 = vpop.permute.xlu0 %986
        %988 = vrot.lane.b32.xlu0 %v948, 112
        %v989 = vpop.permute.xlu0 %988
        %990 = vrot.lane.b32.xlu0 %v952, 112
        %v991 = vpop.permute.xlu0 %990
        %992 = vrot.lane.b32.xlu0 %v958, 112
        %v993 = vpop.permute.xlu0 %992
        %994 = vrot.lane.b32.xlu0 %v962, 112
        %v995 = vpop.permute.xlu0 %994
        %996 = vrot.lane.b32.xlu0 %v968, 112
        %v997 = vpop.permute.xlu0 %996
        %998 = vrot.lane.b32.xlu0 %v972, 112
        %v999 = vpop.permute.xlu0 %998
        %1008 = vrot.lane.b32.xlu0 %v938, 96
        %v1009 = vpop.permute.xlu0 %1008
        %1010 = vrot.lane.b32.xlu0 %v942, 96
        %v1011 = vpop.permute.xlu0 %1010
        %1012 = vrot.lane.b32.xlu0 %v948, 96
        %v1013 = vpop.permute.xlu0 %1012
        %1014 = vrot.lane.b32.xlu0 %v952, 96
        %v1015 = vpop.permute.xlu0 %1014
        %1016 = vrot.lane.b32.xlu0 %v958, 96
        %v1017 = vpop.permute.xlu0 %1016
        %1018 = vrot.lane.b32.xlu0 %v962, 96
        %v1019 = vpop.permute.xlu0 %1018
        %1020 = vrot.lane.b32.xlu0 %v968, 96
        %v1021 = vpop.permute.xlu0 %1020
        %1022 = vrot.lane.b32.xlu0 %v972, 96
        %v1023 = vpop.permute.xlu0 %1022
        %1032 = vrot.lane.b32.xlu0 %v938, 80
        %v1033 = vpop.permute.xlu0 %1032
        %1034 = vrot.lane.b32.xlu0 %v942, 80
        %v1035 = vpop.permute.xlu0 %1034
        %1036 = vrot.lane.b32.xlu0 %v948, 80
        %v1037 = vpop.permute.xlu0 %1036
        %1038 = vrot.lane.b32.xlu0 %v952, 80
        %v1039 = vpop.permute.xlu0 %1038
        %1040 = vrot.lane.b32.xlu0 %v958, 80
        %v1041 = vpop.permute.xlu0 %1040
        %1042 = vrot.lane.b32.xlu0 %v962, 80
        %v1043 = vpop.permute.xlu0 %1042
        %1044 = vrot.lane.b32.xlu0 %v968, 80
        %v1045 = vpop.permute.xlu0 %1044
        %1046 = vrot.lane.b32.xlu0 %v972, 80
        %v1047 = vpop.permute.xlu0 %1046
        %1056 = vrot.lane.b32.xlu0 %v938, 64
        %v1057 = vpop.permute.xlu0 %1056
        %1058 = vrot.lane.b32.xlu0 %v942, 64
        %v1059 = vpop.permute.xlu0 %1058
        %1060 = vrot.lane.b32.xlu0 %v948, 64
        %v1061 = vpop.permute.xlu0 %1060
        %1062 = vrot.lane.b32.xlu0 %v952, 64
        %v1063 = vpop.permute.xlu0 %1062
        %1064 = vrot.lane.b32.xlu0 %v958, 64
        %v1065 = vpop.permute.xlu0 %1064
        %1066 = vrot.lane.b32.xlu0 %v962, 64
        %v1067 = vpop.permute.xlu0 %1066
        %1068 = vrot.lane.b32.xlu0 %v968, 64
        %v1069 = vpop.permute.xlu0 %1068
        %1070 = vrot.lane.b32.xlu0 %v972, 64
        %v1071 = vpop.permute.xlu0 %1070
        %1080 = vrot.lane.b32.xlu0 %v938, 48
        %v1081 = vpop.permute.xlu0 %1080
        %1082 = vrot.lane.b32.xlu0 %v942, 48
        %v1083 = vpop.permute.xlu0 %1082
        %1084 = vrot.lane.b32.xlu0 %v948, 48
        %v1085 = vpop.permute.xlu0 %1084
        %1086 = vrot.lane.b32.xlu0 %v952, 48
        %v1087 = vpop.permute.xlu0 %1086
        %1088 = vrot.lane.b32.xlu0 %v958, 48
        %v1089 = vpop.permute.xlu0 %1088
        %1090 = vrot.lane.b32.xlu0 %v962, 48
        %v1091 = vpop.permute.xlu0 %1090
        %1092 = vrot.lane.b32.xlu0 %v968, 48
        %v1093 = vpop.permute.xlu0 %1092
        %1094 = vrot.lane.b32.xlu0 %v972, 48
        %v1095 = vpop.permute.xlu0 %1094
        %1104 = vrot.lane.b32.xlu0 %v938, 32
        %v1105 = vpop.permute.xlu0 %1104
        %1106 = vrot.lane.b32.xlu0 %v942, 32
        %v1107 = vpop.permute.xlu0 %1106
        %1108 = vrot.lane.b32.xlu0 %v948, 32
        %v1109 = vpop.permute.xlu0 %1108
        %1110 = vrot.lane.b32.xlu0 %v952, 32
        %v1111 = vpop.permute.xlu0 %1110
        %1112 = vrot.lane.b32.xlu0 %v958, 32
        %v1113 = vpop.permute.xlu0 %1112
        %1114 = vrot.lane.b32.xlu0 %v962, 32
        %v1115 = vpop.permute.xlu0 %1114
        %1116 = vrot.lane.b32.xlu0 %v968, 32
        %v1117 = vpop.permute.xlu0 %1116
        %1118 = vrot.lane.b32.xlu0 %v972, 32
        %v1119 = vpop.permute.xlu0 %1118
        %1128 = vrot.lane.b32.xlu0 %v938, 16
        %v1129 = vpop.permute.xlu0 %1128
        %1130 = vrot.lane.b32.xlu0 %v942, 16
        %v1131 = vpop.permute.xlu0 %1130
        %1132 = vrot.lane.b32.xlu0 %v948, 16
        %v1133 = vpop.permute.xlu0 %1132
        %1134 = vrot.lane.b32.xlu0 %v952, 16
        %v1135 = vpop.permute.xlu0 %1134
        %1136 = vrot.lane.b32.xlu0 %v958, 16
        %v1137 = vpop.permute.xlu0 %1136
        %1138 = vrot.lane.b32.xlu0 %v962, 16
        %v1139 = vpop.permute.xlu0 %1138
        %1140 = vrot.lane.b32.xlu0 %v968, 16
        %v1141 = vpop.permute.xlu0 %1140
        %1142 = vrot.lane.b32.xlu0 %v972, 16
        %v1143 = vpop.permute.xlu0 %1142
        %v1152 = vpack.c.bf16 %v942, %v938
        %v1153 = vpack.c.bf16 %v952, %v948
        %v1154 = vpack.c.bf16 %v962, %v958
        %v1155 = vpack.c.bf16 %v972, %v968
        %v1156 = vpack.c.bf16 %v987, %v985
        %v1157 = vpack.c.bf16 %v991, %v989
        %v1158 = vpack.c.bf16 %v995, %v993
        %v1159 = vpack.c.bf16 %v999, %v997
        %v1160 = vpack.c.bf16 %v1011, %v1009
        %v1161 = vpack.c.bf16 %v1015, %v1013
        %v1162 = vpack.c.bf16 %v1019, %v1017
        %v1163 = vpack.c.bf16 %v1023, %v1021
        %v1164 = vpack.c.bf16 %v1035, %v1033
        %v1165 = vpack.c.bf16 %v1039, %v1037
        %v1166 = vpack.c.bf16 %v1043, %v1041
        %v1167 = vpack.c.bf16 %v1047, %v1045
        %v1168 = vpack.c.bf16 %v1059, %v1057
        %v1169 = vpack.c.bf16 %v1063, %v1061
        %v1170 = vpack.c.bf16 %v1067, %v1065
        %v1171 = vpack.c.bf16 %v1071, %v1069
        %v1172 = vpack.c.bf16 %v1083, %v1081
        %v1173 = vpack.c.bf16 %v1087, %v1085
        %v1174 = vpack.c.bf16 %v1091, %v1089
        %v1175 = vpack.c.bf16 %v1095, %v1093
        %v1176 = vpack.c.bf16 %v1107, %v1105
        %v1177 = vpack.c.bf16 %v1111, %v1109
        %v1178 = vpack.c.bf16 %v1115, %v1113
        %v1179 = vpack.c.bf16 %v1119, %v1117
        %v1180 = vpack.c.bf16 %v1131, %v1129
        %v1181 = vpack.c.bf16 %v1135, %v1133
        %v1182 = vpack.c.bf16 %v1139, %v1137
        %v1183 = vpack.c.bf16 %v1143, %v1141
        %v1184 = vpack.c.bf16 %v944, %v940
        %v1185 = vpack.c.bf16 %v954, %v950
        %v1186 = vpack.c.bf16 %v964, %v960
        %v1187 = vpack.c.bf16 %v974, %v970
        %v1188 = vld [vmem:[%s6] sm:$0xff]
        %v1189 = vld [vmem:[%s6 + $0x8] sm:$0xff]
        %v1190 = vld [vmem:[%s6 + $0x10] sm:$0xf]
        %v1191 = vld [vmem:[%s6 + $0x14] sm:$0xff]
        %v1192 = vld [vmem:[%s6 + $0x1c] sm:$0xff]
        %v1193 = vld [vmem:[%s6 + $0x24] sm:$0xf]
        %v1194 = vld [vmem:[%s6 + $0x28] sm:$0xff]
        %v1195 = vld [vmem:[%s6 + $0x30] sm:$0xff]
        %v1196 = vld [vmem:[%s6 + $0x38] sm:$0xf]
        %v1197 = vld [vmem:[%s6 + $0x3c] sm:$0xff]
        %v1198 = vld [vmem:[%s6 + $0x44] sm:$0xff]
        %v1199 = vld [vmem:[%s6 + $0x4c] sm:$0xf]
        %v1200 = vld [vmem:[%s6 + $0x50] sm:$0xff]
        %v1201 = vld [vmem:[%s6 + $0x58] sm:$0xff]
        %v1202 = vld [vmem:[%s6 + $0x60] sm:$0xf]
        %v1203 = vld [vmem:[%s6 + $0x64] sm:$0xff]
        %v1204 = vld [vmem:[%s6 + $0x6c] sm:$0xff]
        %v1205 = vld [vmem:[%s6 + $0x74] sm:$0xf]
        %v1206 = vld [vmem:[%s6 + $0x78] sm:$0xff]
        %v1207 = vld [vmem:[%s6 + $0x80] sm:$0xff]
        %v1208 = vld [vmem:[%s6 + $0x88] sm:$0xf]
        %v1209 = vld [vmem:[%s6 + $0x8c] sm:$0xff]
        %v1210 = vld [vmem:[%s6 + $0x94] sm:$0xff]
        %v1211 = vld [vmem:[%s6 + $0x9c] sm:$0xf]
        %1212 = vset.pattern.permute.xlu0 1
        %1213 = vperm.xlu0 %1212, %v405
        %v1214 = vpop.permute.xlu0 %1213
        %1216 = vset.pattern.permute.xlu0 1
        %1217 = vperm.xlu0 %1216, %v406
        %v1218 = vpop.permute.xlu0 %1217
        %1220 = vset.pattern.permute.xlu0 1
        %1221 = vperm.xlu0 %1220, %v407
        %v1222 = vpop.permute.xlu0 %1221
        %1224 = vset.pattern.permute.xlu0 1
        %1225 = vperm.xlu0 %1224, %v408
        %v1226 = vpop.permute.xlu0 %1225
        %1228 = vset.pattern.permute.xlu0 1
        %1229 = vperm.xlu0 %1228, %v409
        %v1230 = vpop.permute.xlu0 %1229
        %1232 = vset.pattern.permute.xlu0 1
        %1233 = vperm.xlu0 %1232, %v410
        %v1234 = vpop.permute.xlu0 %1233
        %1236 = vset.pattern.permute.xlu0 1
        %1237 = vperm.xlu0 %1236, %v411
        %v1238 = vpop.permute.xlu0 %1237
        %1240 = vset.pattern.permute.xlu0 1
        %1241 = vperm.xlu0 %1240, %v412
        %v1242 = vpop.permute.xlu0 %1241
        %v1268 = vunpack.c.l.b16 %v1188
        %v1269 = vunpack.c.h.b16 %v1188
        %v1270 = vunpack.c.l.b16 %v1189
        %v1271 = vunpack.c.h.b16 %v1189
        %v1272 = vunpack.c.l.b16 %v1190
        %v1273 = vunpack.c.l.b16 %v1191
        %v1274 = vunpack.c.h.b16 %v1191
        %v1275 = vunpack.c.l.b16 %v1192
        %v1276 = vunpack.c.h.b16 %v1192
        %v1277 = vunpack.c.l.b16 %v1193
        %v1278 = vunpack.c.l.b16 %v1194
        %v1279 = vunpack.c.h.b16 %v1194
        %v1280 = vunpack.c.l.b16 %v1195
        %v1281 = vunpack.c.h.b16 %v1195
        %v1282 = vunpack.c.l.b16 %v1196
        %v1283 = vunpack.c.l.b16 %v1197
        %v1284 = vunpack.c.h.b16 %v1197
        %v1285 = vunpack.c.l.b16 %v1198
        %v1286 = vunpack.c.h.b16 %v1198
        %v1287 = vunpack.c.l.b16 %v1199
        %v1288 = vunpack.c.l.b16 %v1200
        %v1289 = vunpack.c.h.b16 %v1200
        %v1290 = vunpack.c.l.b16 %v1201
        %v1291 = vunpack.c.h.b16 %v1201
        %v1292 = vunpack.c.l.b16 %v1202
        %v1293 = vunpack.c.l.b16 %v1203
        %v1294 = vunpack.c.h.b16 %v1203
        %v1295 = vunpack.c.l.b16 %v1204
        %v1296 = vunpack.c.h.b16 %v1204
        %v1297 = vunpack.c.l.b16 %v1205
        %v1298 = vunpack.c.l.b16 %v1206
        %v1299 = vunpack.c.h.b16 %v1206
        %v1300 = vunpack.c.l.b16 %v1207
        %v1301 = vunpack.c.h.b16 %v1207
        %v1302 = vunpack.c.l.b16 %v1208
        %v1303 = vunpack.c.l.b16 %v1209
        %v1304 = vunpack.c.h.b16 %v1209
        %v1305 = vunpack.c.l.b16 %v1210
        %v1306 = vunpack.c.h.b16 %v1210
        %v1307 = vunpack.c.l.b16 %v1211
        %v1308 = vpack.c.b16 %v1273, %v1268
        %v1309 = vpack.c.b16 %v1274, %v1269
        %v1310 = vpack.c.b16 %v1275, %v1270
        %v1311 = vpack.c.b16 %v1276, %v1271
        %v1312 = vpack.c.b16 %v1277, %v1272
        %v1313 = vpack.c.b16 %v1283, %v1278
        %v1314 = vpack.c.b16 %v1284, %v1279
        %v1315 = vpack.c.b16 %v1285, %v1280
        %v1316 = vpack.c.b16 %v1286, %v1281
        %v1317 = vpack.c.b16 %v1287, %v1282
        %v1318 = vpack.c.b16 %v1293, %v1288
        %v1319 = vpack.c.b16 %v1294, %v1289
        %v1320 = vpack.c.b16 %v1295, %v1290
        %v1321 = vpack.c.b16 %v1296, %v1291
        %v1322 = vpack.c.b16 %v1297, %v1292
        %v1323 = vpack.c.b16 %v1303, %v1298
        %v1324 = vpack.c.b16 %v1304, %v1299
        %v1325 = vpack.c.b16 %v1305, %v1300
        %v1326 = vpack.c.b16 %v1306, %v1301
        %v1327 = vpack.c.b16 %v1307, %v1302
        %vm1344 = vcmask 523264
        %v1346 = vsel %vm1344, %v1312, 0
        %v1349 = vsel %vm1344, %v1317, 0
        %v1352 = vsel %vm1344, %v1322, 0
        %v1355 = vsel %vm1344, %v1327, 0
        %1357 = vmatprep.subr.bf16.mxu0 0
        %1358 = vmatpush1.bf16.msra.mxu0 %v1152
        %1359 = vmatprep.subr.bf16.mxu0 0
        %1360 = vmatpush1.bf16.msra.mxu0 %v1153
        %1361 = vmatprep.subr.bf16.mxu0 0
        %1362 = vmatpush1.bf16.msra.mxu0 %v1154
        %1363 = vmatprep.subr.bf16.mxu0 0
        %1364 = vmatpush1.bf16.msra.mxu0 %v1155
        %1365 = vmatprep.subr.bf16.mxu0 0
        %1366 = vmatpush1.bf16.msra.mxu0 %v1156
        %1367 = vmatprep.subr.bf16.mxu0 0
        %1368 = vmatpush1.bf16.msra.mxu0 %v1157
        %1369 = vmatprep.subr.bf16.mxu0 0
        %1370 = vmatpush1.bf16.msra.mxu0 %v1158
        %1371 = vmatprep.subr.bf16.mxu0 0
        %1372 = vmatpush1.bf16.msra.mxu0 %v1159
        %1373 = vmatprep.subr.bf16.mxu0 0
        %1374 = vmatpush1.bf16.msra.mxu0 %v1160
        %1375 = vmatprep.subr.bf16.mxu0 0
        %1376 = vmatpush1.bf16.msra.mxu0 %v1161
        %1377 = vmatprep.subr.bf16.mxu0 0
        %1378 = vmatpush1.bf16.msra.mxu0 %v1162
        %1379 = vmatprep.subr.bf16.mxu0 0
        %1380 = vmatpush1.bf16.msra.mxu0 %v1163
        %1381 = vmatprep.subr.bf16.mxu0 0
        %1382 = vmatpush1.bf16.msra.mxu0 %v1164
        %1383 = vmatprep.subr.bf16.mxu0 0
        %1384 = vmatpush1.bf16.msra.mxu0 %v1165
        %1385 = vmatprep.subr.bf16.mxu0 0
        %1386 = vmatpush1.bf16.msra.mxu0 %v1166
        %1387 = vmatprep.subr.bf16.mxu0 0
        %1388 = vmatpush1.bf16.msra.mxu0 %v1167
        %1389 = vmatprep.mubr.bf16.mxu0 %v1309
        %1390 = vmatmul.mubr.bf16.gmra.mrb[0].mxu0 %v1308
        %v1391 = vpop.f32.mrb[0].mxu0
        %v1392 = vadd.f32 %v1214, %v1391
        %v1393 = vpop.f32.mrb[0].mxu0
        %v1394 = vpop.f32.mrb[0].mxu0
        %v1395 = vadd.f32 %v1218, %v1394
        %v1396 = vpop.f32.mrb[0].mxu0
        %1397 = vmatprep.mubr.bf16.mxu0 %v1314
        %1398 = vmatmul.mubr.bf16.gmra.mrb[0].mxu0 %v1313
        %v1399 = vpop.f32.mrb[0].mxu0
        %v1400 = vadd.f32 %v1222, %v1399
        %v1401 = vpop.f32.mrb[0].mxu0
        %v1402 = vpop.f32.mrb[0].mxu0
        %v1403 = vadd.f32 %v1226, %v1402
        %v1404 = vpop.f32.mrb[0].mxu0
        %1405 = vmatprep.mubr.bf16.mxu0 %v1319
        %1406 = vmatmul.mubr.bf16.gmra.mrb[0].mxu0 %v1318
        %v1407 = vpop.f32.mrb[0].mxu0
        %v1408 = vadd.f32 %v1230, %v1407
        %v1409 = vpop.f32.mrb[0].mxu0
        %v1410 = vpop.f32.mrb[0].mxu0
        %v1411 = vadd.f32 %v1234, %v1410
        %v1412 = vpop.f32.mrb[0].mxu0
        %1413 = vmatprep.mubr.bf16.mxu0 %v1324
        %1414 = vmatmul.mubr.bf16.gmra.mrb[0].mxu0 %v1323
        %v1415 = vpop.f32.mrb[0].mxu0
        %v1416 = vadd.f32 %v1238, %v1415
        %v1417 = vpop.f32.mrb[0].mxu0
        %v1418 = vpop.f32.mrb[0].mxu0
        %v1419 = vadd.f32 %v1242, %v1418
        %v1420 = vpop.f32.mrb[0].mxu0
        %1421 = vdwg.mxu0
        %1422 = vmatprep.subr.bf16.mxu0 0
        %1423 = vmatpush1.bf16.msra.mxu0 %v1168
        %1424 = vmatprep.subr.bf16.mxu0 0
        %1425 = vmatpush1.bf16.msra.mxu0 %v1169
        %1426 = vmatprep.subr.bf16.mxu0 0
        %1427 = vmatpush1.bf16.msra.mxu0 %v1170
        %1428 = vmatprep.subr.bf16.mxu0 0
        %1429 = vmatpush1.bf16.msra.mxu0 %v1171
        %1430 = vmatprep.subr.bf16.mxu0 0
        %1431 = vmatpush1.bf16.msra.mxu0 %v1172
        %1432 = vmatprep.subr.bf16.mxu0 0
        %1433 = vmatpush1.bf16.msra.mxu0 %v1173
        %1434 = vmatprep.subr.bf16.mxu0 0
        %1435 = vmatpush1.bf16.msra.mxu0 %v1174
        %1436 = vmatprep.subr.bf16.mxu0 0
        %1437 = vmatpush1.bf16.msra.mxu0 %v1175
        %1438 = vmatprep.subr.bf16.mxu0 0
        %1439 = vmatpush1.bf16.msra.mxu0 %v1176
        %1440 = vmatprep.subr.bf16.mxu0 0
        %1441 = vmatpush1.bf16.msra.mxu0 %v1177
        %1442 = vmatprep.subr.bf16.mxu0 0
        %1443 = vmatpush1.bf16.msra.mxu0 %v1178
        %1444 = vmatprep.subr.bf16.mxu0 0
        %1445 = vmatpush1.bf16.msra.mxu0 %v1179
        %1446 = vmatprep.subr.bf16.mxu0 0
        %1447 = vmatpush1.bf16.msra.mxu0 %v1180
        %1448 = vmatprep.subr.bf16.mxu0 0
        %1449 = vmatpush1.bf16.msra.mxu0 %v1181
        %1450 = vmatprep.subr.bf16.mxu0 0
        %1451 = vmatpush1.bf16.msra.mxu0 %v1182
        %1452 = vmatprep.subr.bf16.mxu0 0
        %1453 = vmatpush1.bf16.msra.mxu0 %v1183
        %1454 = vmatprep.mubr.bf16.mxu0 %v1311
        %1455 = vmatmul.mubr.bf16.gmra.mrb[0].mxu0 %v1310
        %v1456 = vpop.f32.mrb[0].mxu0
        %v1457 = vadd.f32 %v1392, %v1456
        %v1458 = vpop.f32.mrb[0].mxu0
        %v1459 = vpop.f32.mrb[0].mxu0
        %v1460 = vadd.f32 %v1395, %v1459
        %v1461 = vpop.f32.mrb[0].mxu0
        %1462 = vmatprep.mubr.bf16.mxu0 %v1316
        %1463 = vmatmul.mubr.bf16.gmra.mrb[0].mxu0 %v1315
        %v1464 = vpop.f32.mrb[0].mxu0
        %v1465 = vadd.f32 %v1400, %v1464
        %v1466 = vpop.f32.mrb[0].mxu0
        %v1467 = vpop.f32.mrb[0].mxu0
        %v1468 = vadd.f32 %v1403, %v1467
        %v1469 = vpop.f32.mrb[0].mxu0
        %1470 = vmatprep.mubr.bf16.mxu0 %v1321
        %1471 = vmatmul.mubr.bf16.gmra.mrb[0].mxu0 %v1320
        %v1472 = vpop.f32.mrb[0].mxu0
        %v1473 = vadd.f32 %v1408, %v1472
        %v1474 = vpop.f32.mrb[0].mxu0
        %v1475 = vpop.f32.mrb[0].mxu0
        %v1476 = vadd.f32 %v1411, %v1475
        %v1477 = vpop.f32.mrb[0].mxu0
        %1478 = vmatprep.mubr.bf16.mxu0 %v1326
        %1479 = vmatmul.mubr.bf16.gmra.mrb[0].mxu0 %v1325
        %v1480 = vpop.f32.mrb[0].mxu0
        %v1481 = vadd.f32 %v1416, %v1480
        %v1482 = vpop.f32.mrb[0].mxu0
        %v1483 = vpop.f32.mrb[0].mxu0
        %v1484 = vadd.f32 %v1419, %v1483
        %v1485 = vpop.f32.mrb[0].mxu0
        %1486 = vdwg.mxu0
        %1487 = vmatprep.subr.bf16.mxu0 0
        %1488 = vmatpush1.bf16.msra.mxu0 %v1184
        %1489 = vmatprep.subr.bf16.mxu0 0
        %1490 = vmatpush1.bf16.msra.mxu0 %v1185
        %1491 = vmatprep.subr.bf16.mxu0 0
        %1492 = vmatpush1.bf16.msra.mxu0 %v1186
        %1493 = vmatprep.subr.bf16.mxu0 0
        %1494 = vmatpush1.bf16.msra.mxu0 %v1187
        %1495 = vmatprep.subr.bf16.mxu0 0
        %1496 = vmatpush1.bf16.msra.mxu0 0
        %1497 = vmatprep.subr.bf16.mxu0 0
        %1498 = vmatpush1.bf16.msra.mxu0 0
        %1499 = vmatprep.subr.bf16.mxu0 0
        %1500 = vmatpush1.bf16.msra.mxu0 0
        %1501 = vmatprep.subr.bf16.mxu0 0
        %1502 = vmatpush1.bf16.msra.mxu0 0
        %1503 = vmatprep.subr.bf16.mxu0 0
        %1504 = vmatpush1.bf16.msra.mxu0 0
        %1505 = vmatprep.subr.bf16.mxu0 0
        %1506 = vmatpush1.bf16.msra.mxu0 0
        %1507 = vmatprep.subr.bf16.mxu0 0
        %1508 = vmatpush1.bf16.msra.mxu0 0
        %1509 = vmatprep.subr.bf16.mxu0 0
        %1510 = vmatpush1.bf16.msra.mxu0 0
        %1511 = vmatprep.subr.bf16.mxu0 0
        %1512 = vmatpush1.bf16.msra.mxu0 0
        %1513 = vmatprep.subr.bf16.mxu0 0
        %1514 = vmatpush1.bf16.msra.mxu0 0
        %1515 = vmatprep.subr.bf16.mxu0 0
        %1516 = vmatpush1.bf16.msra.mxu0 0
        %1517 = vmatprep.subr.bf16.mxu0 0
        %1518 = vmatpush1.bf16.msra.mxu0 0
        %1519 = vmatprep.mubr.bf16.mxu0 0
        %1520 = vmatmul.mubr.bf16.gmra.mrb[0].mxu0 %v1346
        %v1521 = vpop.f32.mrb[0].mxu0
        %v1522 = vadd.f32 %v1457, %v1521
        %v1523 = vpop.f32.mrb[0].mxu0
        %v1524 = vpop.f32.mrb[0].mxu0
        %v1525 = vadd.f32 %v1460, %v1524
        %v1526 = vpop.f32.mrb[0].mxu0
        %1527 = vmatprep.mubr.bf16.mxu0 0
        %1528 = vmatmul.mubr.bf16.gmra.mrb[0].mxu0 %v1349
        %v1529 = vpop.f32.mrb[0].mxu0
        %v1530 = vadd.f32 %v1465, %v1529
        %v1531 = vpop.f32.mrb[0].mxu0
        %v1532 = vpop.f32.mrb[0].mxu0
        %v1533 = vadd.f32 %v1468, %v1532
        %v1534 = vpop.f32.mrb[0].mxu0
        %1535 = vmatprep.mubr.bf16.mxu0 0
        %1536 = vmatmul.mubr.bf16.gmra.mrb[0].mxu0 %v1352
        %v1537 = vpop.f32.mrb[0].mxu0
        %v1538 = vadd.f32 %v1473, %v1537
        %v1539 = vpop.f32.mrb[0].mxu0
        %v1540 = vpop.f32.mrb[0].mxu0
        %v1541 = vadd.f32 %v1476, %v1540
        %v1542 = vpop.f32.mrb[0].mxu0
        %1543 = vmatprep.mubr.bf16.mxu0 0
        %1544 = vmatmul.mubr.bf16.gmra.mrb[0].mxu0 %v1355
        %v1545 = vpop.f32.mrb[0].mxu0
        %v1546 = vadd.f32 %v1481, %v1545
        %v1547 = vpop.f32.mrb[0].mxu0
        %v1548 = vpop.f32.mrb[0].mxu0
        %v1549 = vadd.f32 %v1484, %v1548
        %v1550 = vpop.f32.mrb[0].mxu0
        %1551 = vdwg.mxu0
        %v1552 = vsel %vm417, %v1522, 0.0
        %1553 = vadd.xlane.f32.xlu0 %v1552
        %v1554 = vpop.xlane.xlu0 %1553
        %v1555 = vsel %vm417, %v1525, 0.0
        %1556 = vadd.xlane.f32.xlu0 %v1555
        %v1557 = vpop.xlane.xlu0 %1556
        %v1558 = vsel %vm417, %v1530, 0.0
        %1559 = vadd.xlane.f32.xlu0 %v1558
        %v1560 = vpop.xlane.xlu0 %1559
        %v1561 = vsel %vm417, %v1533, 0.0
        %1562 = vadd.xlane.f32.xlu0 %v1561
        %v1563 = vpop.xlane.xlu0 %1562
        %v1564 = vsel %vm417, %v1538, 0.0
        %1565 = vadd.xlane.f32.xlu0 %v1564
        %v1566 = vpop.xlane.xlu0 %1565
        %v1567 = vsel %vm417, %v1541, 0.0
        %1568 = vadd.xlane.f32.xlu0 %v1567
        %v1569 = vpop.xlane.xlu0 %1568
        %v1570 = vsel %vm417, %v1546, 0.0
        %1571 = vadd.xlane.f32.xlu0 %v1570
        %v1572 = vpop.xlane.xlu0 %1571
        %v1573 = vsel %vm417, %v1549, 0.0
        %1574 = vadd.xlane.f32.xlu0 %v1573
        %v1575 = vpop.xlane.xlu0 %1574
        %v1576 = vmul.f32 %v1522, %v1522
        %v1577 = vmul.f32 %v1525, %v1525
        %v1578 = vmul.f32 %v1530, %v1530
        %v1579 = vmul.f32 %v1533, %v1533
        %v1580 = vmul.f32 %v1538, %v1538
        %v1581 = vmul.f32 %v1541, %v1541
        %v1582 = vmul.f32 %v1546, %v1546
        %v1583 = vmul.f32 %v1549, %v1549
        %v1584 = vsel %vm417, %v1576, 0.0
        %1585 = vadd.xlane.f32.xlu0 %v1584
        %v1586 = vpop.xlane.xlu0 %1585
        %v1587 = vsel %vm417, %v1577, 0.0
        %1588 = vadd.xlane.f32.xlu0 %v1587
        %v1589 = vpop.xlane.xlu0 %1588
        %v1590 = vsel %vm417, %v1578, 0.0
        %1591 = vadd.xlane.f32.xlu0 %v1590
        %v1592 = vpop.xlane.xlu0 %1591
        %v1593 = vsel %vm417, %v1579, 0.0
        %1594 = vadd.xlane.f32.xlu0 %v1593
        %v1595 = vpop.xlane.xlu0 %1594
        %v1596 = vsel %vm417, %v1580, 0.0
        %1597 = vadd.xlane.f32.xlu0 %v1596
        %v1598 = vpop.xlane.xlu0 %1597
        %v1599 = vsel %vm417, %v1581, 0.0
        %1600 = vadd.xlane.f32.xlu0 %v1599
        %v1601 = vpop.xlane.xlu0 %1600
        %v1602 = vsel %vm417, %v1582, 0.0
        %1603 = vadd.xlane.f32.xlu0 %v1602
        %v1604 = vpop.xlane.xlu0 %1603
        %v1605 = vsel %vm417, %v1583, 0.0
        %1606 = vadd.xlane.f32.xlu0 %v1605
        %v1607 = vpop.xlane.xlu0 %1606
        %vm1608 = vcmask 7168
        %v1609 = vsel %vm1608, %v1554, %v1586
        %v1610 = vsel %vm1608, %v1557, %v1589
        %v1611 = vsel %vm1608, %v1560, %v1592
        %v1612 = vsel %vm1608, %v1563, %v1595
        %v1613 = vsel %vm1608, %v1566, %v1598
        %v1614 = vsel %vm1608, %v1569, %v1601
        %v1615 = vsel %vm1608, %v1572, %v1604
        %v1616 = vsel %vm1608, %v1575, %v1607
        %v1617 = vld [vmem:[%s7] sm:$0xff]
        %v1618 = vld [vmem:[%s7 + $0x8] sm:$0xff]
        %v1619 = vld [vmem:[%s7 + $0x10] sm:$0xff]
        %v1620 = vld [vmem:[%s7 + $0x18] sm:$0xff]
        %v1621 = vld [vmem:[%s7 + $0x20] sm:$0xff]
        %v1622 = vld [vmem:[%s7 + $0x28] sm:$0xff]
        %v1623 = vld [vmem:[%s7 + $0x30] sm:$0xff]
        %v1624 = vld [vmem:[%s7 + $0x38] sm:$0xff]
        %v1626 = vsel %vm1344, %v1617, 0
        %v1629 = vsel %vm1344, %v1618, 0
        %v1632 = vsel %vm1344, %v1619, 0
        %v1635 = vsel %vm1344, %v1620, 0
        %v1638 = vsel %vm1344, %v1621, 0
        %v1641 = vsel %vm1344, %v1622, 0
        %v1644 = vsel %vm1344, %v1623, 0
        %v1647 = vsel %vm1344, %v1624, 0
        %1649 = vmatprep.subr.mxu0 0.0
        %1650 = vmatpush1.msra.mxu0 %v1609
        %1651 = vmatprep.subr.mxu0 0.0
        %1652 = vmatpush1.msra.mxu0 %v1610
        %1653 = vmatprep.subr.mxu0 0.0
        %1654 = vmatpush1.msra.mxu0 %v1611
        %1655 = vmatprep.subr.mxu0 0.0
        %1656 = vmatpush1.msra.mxu0 %v1612
        %1657 = vmatprep.subr.mxu0 0.0
        %1658 = vmatpush1.msra.mxu0 %v1613
        %1659 = vmatprep.subr.mxu0 0.0
        %1660 = vmatpush1.msra.mxu0 %v1614
        %1661 = vmatprep.subr.mxu0 0.0
        %1662 = vmatpush1.msra.mxu0 %v1615
        %1663 = vmatprep.subr.mxu0 0.0
        %1664 = vmatpush1.msra.mxu0 %v1616
        %1665 = vmatprep.subr.mxu0 0.0
        %1666 = vmatpush1.msra.mxu0 0.0
        %1667 = vmatprep.subr.mxu0 0.0
        %1668 = vmatpush1.msra.mxu0 0.0
        %1669 = vmatprep.subr.mxu0 0.0
        %1670 = vmatpush1.msra.mxu0 0.0
        %1671 = vmatprep.subr.mxu0 0.0
        %1672 = vmatpush1.msra.mxu0 0.0
        %1673 = vmatprep.subr.mxu0 0.0
        %1674 = vmatpush1.msra.mxu0 0.0
        %1675 = vmatprep.subr.mxu0 0.0
        %1676 = vmatpush1.msra.mxu0 0.0
        %1677 = vmatprep.subr.mxu0 0.0
        %1678 = vmatpush1.msra.mxu0 0.0
        %1679 = vmatprep.subr.mxu0 0.0
        %1680 = vmatpush1.msra.mxu0 0.0
        %1681 = vmatprep.subr.mxu0 0.0
        %1682 = vmatpush1.msra.mxu0 0.0
        %1683 = vmatprep.subr.mxu0 0.0
        %1684 = vmatpush1.msra.mxu0 0.0
        %1685 = vmatprep.subr.mxu0 0.0
        %1686 = vmatpush1.msra.mxu0 0.0
        %1687 = vmatprep.subr.mxu0 0.0
        %1688 = vmatpush1.msra.mxu0 0.0
        %1689 = vmatprep.subr.mxu0 0.0
        %1690 = vmatpush1.msra.mxu0 0.0
        %1691 = vmatprep.subr.mxu0 0.0
        %1692 = vmatpush1.msra.mxu0 0.0
        %1693 = vmatprep.subr.mxu0 0.0
        %1694 = vmatpush1.msra.mxu0 0.0
        %1695 = vmatprep.subr.mxu0 0.0
        %1696 = vmatpush1.msra.mxu0 0.0
        %1697 = vmatprep.subr.mxu0 0.0
        %1698 = vmatpush1.msra.mxu0 0.0
        %1699 = vmatprep.subr.mxu0 0.0
        %1700 = vmatpush1.msra.mxu0 0.0
        %1701 = vmatprep.subr.mxu0 0.0
        %1702 = vmatpush1.msra.mxu0 0.0
        %1703 = vmatprep.subr.mxu0 0.0
        %1704 = vmatpush1.msra.mxu0 0.0
        %1705 = vmatprep.subr.mxu0 0.0
        %1706 = vmatpush1.msra.mxu0 0.0
        %1707 = vmatprep.subr.mxu0 0.0
        %1708 = vmatpush1.msra.mxu0 0.0
        %1709 = vmatprep.subr.mxu0 0.0
        %1710 = vmatpush1.msra.mxu0 0.0
        %1711 = vmatprep.subr.mxu0 0.0
        %1712 = vmatpush1.msra.mxu0 0.0
        %1713 = vmatprep.mubr.f32.mxu0 0.0
        %1714 = vmatmul.mubr.f32.gmra.mrb[0].mxu0 %v1626
        %v1715 = vpop.f32.mrb[0].mxu0
        %v1716 = vadd.f32 0.0, %v1715
        %v1717 = vpop.f32.mrb[0].mxu0
        %1718 = vmatprep.mubr.f32.mxu0 0.0
        %1719 = vmatmul.mubr.f32.gmra.mrb[0].mxu0 %v1629
        %v1720 = vpop.f32.mrb[0].mxu0
        %v1721 = vadd.f32 0.0, %v1720
        %v1722 = vpop.f32.mrb[0].mxu0
        %1723 = vmatprep.mubr.f32.mxu0 0.0
        %1724 = vmatmul.mubr.f32.gmra.mrb[0].mxu0 %v1632
        %v1725 = vpop.f32.mrb[0].mxu0
        %v1726 = vadd.f32 0.0, %v1725
        %v1727 = vpop.f32.mrb[0].mxu0
        %1728 = vmatprep.mubr.f32.mxu0 0.0
        %1729 = vmatmul.mubr.f32.gmra.mrb[0].mxu0 %v1635
        %v1730 = vpop.f32.mrb[0].mxu0
        %v1731 = vadd.f32 0.0, %v1730
        %v1732 = vpop.f32.mrb[0].mxu0
        %1733 = vmatprep.mubr.f32.mxu0 0.0
        %1734 = vmatmul.mubr.f32.gmra.mrb[0].mxu0 %v1638
        %v1735 = vpop.f32.mrb[0].mxu0
        %v1736 = vadd.f32 0.0, %v1735
        %v1737 = vpop.f32.mrb[0].mxu0
        %1738 = vmatprep.mubr.f32.mxu0 0.0
        %1739 = vmatmul.mubr.f32.gmra.mrb[0].mxu0 %v1641
        %v1740 = vpop.f32.mrb[0].mxu0
        %v1741 = vadd.f32 0.0, %v1740
        %v1742 = vpop.f32.mrb[0].mxu0
        %1743 = vmatprep.mubr.f32.mxu0 0.0
        %1744 = vmatmul.mubr.f32.gmra.mrb[0].mxu0 %v1644
        %v1745 = vpop.f32.mrb[0].mxu0
        %v1746 = vadd.f32 0.0, %v1745
        %v1747 = vpop.f32.mrb[0].mxu0
        %1748 = vmatprep.mubr.f32.mxu0 0.0
        %1749 = vmatmul.mubr.f32.gmra.mrb[0].mxu0 %v1647
        %v1750 = vpop.f32.mrb[0].mxu0
        %v1751 = vadd.f32 0.0, %v1750
        %v1752 = vpop.f32.mrb[0].mxu0
        %1753 = vdwg.mxu0
        %v1754 = vmul.f32 %v1716, %v1716
        %v1755 = vmul.f32 %v1721, %v1721
        %v1756 = vmul.f32 %v1726, %v1726
        %v1757 = vmul.f32 %v1731, %v1731
        %v1758 = vmul.f32 %v1736, %v1736
        %v1759 = vmul.f32 %v1741, %v1741
        %v1760 = vmul.f32 %v1746, %v1746
        %v1761 = vmul.f32 %v1751, %v1751
        %1770 = vrot.lane.b32.xlu0 %v1754, 1
        %v1771 = vpop.permute.xlu0 %1770
        %1772 = vrot.lane.b32.xlu0 %v1755, 1
        %v1773 = vpop.permute.xlu0 %1772
        %1774 = vrot.lane.b32.xlu0 %v1756, 1
        %v1775 = vpop.permute.xlu0 %1774
        %1776 = vrot.lane.b32.xlu0 %v1757, 1
        %v1777 = vpop.permute.xlu0 %1776
        %1778 = vrot.lane.b32.xlu0 %v1758, 1
        %v1779 = vpop.permute.xlu0 %1778
        %1780 = vrot.lane.b32.xlu0 %v1759, 1
        %v1781 = vpop.permute.xlu0 %1780
        %1782 = vrot.lane.b32.xlu0 %v1760, 1
        %v1783 = vpop.permute.xlu0 %1782
        %1784 = vrot.lane.b32.xlu0 %v1761, 1
        %v1785 = vpop.permute.xlu0 %1784
        %v1794 = vsub.f32 %v1716, %v1771
        %v1795 = vsub.f32 %v1721, %v1773
        %v1796 = vsub.f32 %v1726, %v1775
        %v1797 = vsub.f32 %v1731, %v1777
        %v1798 = vsub.f32 %v1736, %v1779
        %v1799 = vsub.f32 %v1741, %v1781
        %v1800 = vsub.f32 %v1746, %v1783
        %v1801 = vsub.f32 %v1751, %v1785
        %v1802 = vmax.f32 %v1794, 0.0
        %v1803 = vmax.f32 %v1795, 0.0
        %v1804 = vmax.f32 %v1796, 0.0
        %v1805 = vmax.f32 %v1797, 0.0
        %v1806 = vmax.f32 %v1798, 0.0
        %v1807 = vmax.f32 %v1799, 0.0
        %v1808 = vmax.f32 %v1800, 0.0
        %v1809 = vmax.f32 %v1801, 0.0
        %1811 = vset.pattern.permute.xlu0 0
        %1812 = vperm.xlu0 %1811, %v1716
        %v1813 = vpop.permute.xlu0 %1812
        %1816 = vset.pattern.permute.xlu0 0
        %1817 = vperm.xlu0 %1816, %v1721
        %v1818 = vpop.permute.xlu0 %1817
        %1821 = vset.pattern.permute.xlu0 0
        %1822 = vperm.xlu0 %1821, %v1726
        %v1823 = vpop.permute.xlu0 %1822
        %1826 = vset.pattern.permute.xlu0 0
        %1827 = vperm.xlu0 %1826, %v1731
        %v1828 = vpop.permute.xlu0 %1827
        %1831 = vset.pattern.permute.xlu0 0
        %1832 = vperm.xlu0 %1831, %v1736
        %v1833 = vpop.permute.xlu0 %1832
        %1836 = vset.pattern.permute.xlu0 0
        %1837 = vperm.xlu0 %1836, %v1741
        %v1838 = vpop.permute.xlu0 %1837
        %1841 = vset.pattern.permute.xlu0 0
        %1842 = vperm.xlu0 %1841, %v1746
        %v1843 = vpop.permute.xlu0 %1842
        %1846 = vset.pattern.permute.xlu0 0
        %1847 = vperm.xlu0 %1846, %v1751
        %v1848 = vpop.permute.xlu0 %1847
        %v1850 = vsub.f32 %v1522, %v1813
        %v1851 = vsub.f32 %v1525, %v1818
        %v1852 = vsub.f32 %v1530, %v1823
        %v1853 = vsub.f32 %v1533, %v1828
        %v1854 = vsub.f32 %v1538, %v1833
        %v1855 = vsub.f32 %v1541, %v1838
        %v1856 = vsub.f32 %v1546, %v1843
        %v1857 = vsub.f32 %v1549, %v1848
        %v1858 = vadd.f32 %v1802, 1e-05
        %v1859 = vadd.f32 %v1803, 1e-05
        %v1860 = vadd.f32 %v1804, 1e-05
        %v1861 = vadd.f32 %v1805, 1e-05
        %v1862 = vadd.f32 %v1806, 1e-05
        %v1863 = vadd.f32 %v1807, 1e-05
        %v1864 = vadd.f32 %v1808, 1e-05
        %v1865 = vadd.f32 %v1809, 1e-05
        %v1866 = vrsqrt.pop %v1858
        %v1867 = vrsqrt.pop %v1859
        %v1868 = vrsqrt.pop %v1860
        %v1869 = vrsqrt.pop %v1861
        %v1870 = vrsqrt.pop %v1862
        %v1871 = vrsqrt.pop %v1863
        %v1872 = vrsqrt.pop %v1864
        %v1873 = vrsqrt.pop %v1865
        %1875 = vset.pattern.permute.xlu0 1
        %1876 = vperm.xlu0 %1875, %v1866
        %v1877 = vpop.permute.xlu0 %1876
        %1880 = vset.pattern.permute.xlu0 1
        %1881 = vperm.xlu0 %1880, %v1867
        %v1882 = vpop.permute.xlu0 %1881
        %1885 = vset.pattern.permute.xlu0 1
        %1886 = vperm.xlu0 %1885, %v1868
        %v1887 = vpop.permute.xlu0 %1886
        %1890 = vset.pattern.permute.xlu0 1
        %1891 = vperm.xlu0 %1890, %v1869
        %v1892 = vpop.permute.xlu0 %1891
        %1895 = vset.pattern.permute.xlu0 1
        %1896 = vperm.xlu0 %1895, %v1870
        %v1897 = vpop.permute.xlu0 %1896
        %1900 = vset.pattern.permute.xlu0 1
        %1901 = vperm.xlu0 %1900, %v1871
        %v1902 = vpop.permute.xlu0 %1901
        %1905 = vset.pattern.permute.xlu0 1
        %1906 = vperm.xlu0 %1905, %v1872
        %v1907 = vpop.permute.xlu0 %1906
        %1910 = vset.pattern.permute.xlu0 1
        %1911 = vperm.xlu0 %1910, %v1873
        %v1912 = vpop.permute.xlu0 %1911
        %v1914 = vmul.f32 %v1850, %v1877
        %v1915 = vmul.f32 %v1851, %v1882
        %v1916 = vmul.f32 %v1852, %v1887
        %v1917 = vmul.f32 %v1853, %v1892
        %v1918 = vmul.f32 %v1854, %v1897
        %v1919 = vmul.f32 %v1855, %v1902
        %v1920 = vmul.f32 %v1856, %v1907
        %v1921 = vmul.f32 %v1857, %v1912
        %1922 = vset.pattern.permute.xlu0 2
        %1923 = vperm.xlu0 %1922, %v405
        %v1924 = vpop.permute.xlu0 %1923
        %1926 = vset.pattern.permute.xlu0 2
        %1927 = vperm.xlu0 %1926, %v406
        %v1928 = vpop.permute.xlu0 %1927
        %1930 = vset.pattern.permute.xlu0 2
        %1931 = vperm.xlu0 %1930, %v407
        %v1932 = vpop.permute.xlu0 %1931
        %1934 = vset.pattern.permute.xlu0 2
        %1935 = vperm.xlu0 %1934, %v408
        %v1936 = vpop.permute.xlu0 %1935
        %1938 = vset.pattern.permute.xlu0 2
        %1939 = vperm.xlu0 %1938, %v409
        %v1940 = vpop.permute.xlu0 %1939
        %1942 = vset.pattern.permute.xlu0 2
        %1943 = vperm.xlu0 %1942, %v410
        %v1944 = vpop.permute.xlu0 %1943
        %1946 = vset.pattern.permute.xlu0 2
        %1947 = vperm.xlu0 %1946, %v411
        %v1948 = vpop.permute.xlu0 %1947
        %1950 = vset.pattern.permute.xlu0 2
        %1951 = vperm.xlu0 %1950, %v412
        %v1952 = vpop.permute.xlu0 %1951
        %v1954 = vmul.f32 %v1914, %v1924
        %v1955 = vmul.f32 %v1915, %v1928
        %v1956 = vmul.f32 %v1916, %v1932
        %v1957 = vmul.f32 %v1917, %v1936
        %v1958 = vmul.f32 %v1918, %v1940
        %v1959 = vmul.f32 %v1919, %v1944
        %v1960 = vmul.f32 %v1920, %v1948
        %v1961 = vmul.f32 %v1921, %v1952
        %1962 = vset.pattern.permute.xlu0 3
        %1963 = vperm.xlu0 %1962, %v405
        %v1964 = vpop.permute.xlu0 %1963
        %1966 = vset.pattern.permute.xlu0 3
        %1967 = vperm.xlu0 %1966, %v406
        %v1968 = vpop.permute.xlu0 %1967
        %1970 = vset.pattern.permute.xlu0 3
        %1971 = vperm.xlu0 %1970, %v407
        %v1972 = vpop.permute.xlu0 %1971
        %1974 = vset.pattern.permute.xlu0 3
        %1975 = vperm.xlu0 %1974, %v408
        %v1976 = vpop.permute.xlu0 %1975
        %1978 = vset.pattern.permute.xlu0 3
        %1979 = vperm.xlu0 %1978, %v409
        %v1980 = vpop.permute.xlu0 %1979
        %1982 = vset.pattern.permute.xlu0 3
        %1983 = vperm.xlu0 %1982, %v410
        %v1984 = vpop.permute.xlu0 %1983
        %1986 = vset.pattern.permute.xlu0 3
        %1987 = vperm.xlu0 %1986, %v411
        %v1988 = vpop.permute.xlu0 %1987
        %1990 = vset.pattern.permute.xlu0 3
        %1991 = vperm.xlu0 %1990, %v412
        %v1992 = vpop.permute.xlu0 %1991
        %v1994 = vadd.f32 %v1954, %v1964
        %v1995 = vadd.f32 %v1955, %v1968
        %v1996 = vadd.f32 %v1956, %v1972
        %v1997 = vadd.f32 %v1957, %v1976
        %v1998 = vadd.f32 %v1958, %v1980
        %v1999 = vadd.f32 %v1959, %v1984
        %v2000 = vadd.f32 %v1960, %v1988
        %v2001 = vadd.f32 %v1961, %v1992
        %v2002 = vmax.f32 %v1994, 0.0
        %v2003 = vmax.f32 %v1995, 0.0
        %v2004 = vmax.f32 %v1996, 0.0
        %v2005 = vmax.f32 %v1997, 0.0
        %v2006 = vmax.f32 %v1998, 0.0
        %v2007 = vmax.f32 %v1999, 0.0
        %v2008 = vmax.f32 %v2000, 0.0
        %v2009 = vmax.f32 %v2001, 0.0
        %vm2010 = vcmp.ne.f32.partialorder %v1994, %v1994
        %vm2011 = vcmp.ne.f32.partialorder %v1995, %v1995
        %vm2012 = vcmp.ne.f32.partialorder %v1996, %v1996
        %vm2013 = vcmp.ne.f32.partialorder %v1997, %v1997
        %vm2014 = vcmp.ne.f32.partialorder %v1998, %v1998
        %vm2015 = vcmp.ne.f32.partialorder %v1999, %v1999
        %vm2016 = vcmp.ne.f32.partialorder %v2000, %v2000
        %vm2017 = vcmp.ne.f32.partialorder %v2001, %v2001
        %v2018 = vadd.f32 %v1994, 0.0
        %v2019 = vadd.f32 %v1995, 0.0
        %v2020 = vadd.f32 %v1996, 0.0
        %v2021 = vadd.f32 %v1997, 0.0
        %v2022 = vadd.f32 %v1998, 0.0
        %v2023 = vadd.f32 %v1999, 0.0
        %v2024 = vadd.f32 %v2000, 0.0
        %v2025 = vadd.f32 %v2001, 0.0
        %v2026 = vand.u32 2147483647, %v1994
        %v2027 = vand.u32 2147483647, %v1995
        %v2028 = vand.u32 2147483647, %v1996
        %v2029 = vand.u32 2147483647, %v1997
        %v2030 = vand.u32 2147483647, %v1998
        %v2031 = vand.u32 2147483647, %v1999
        %v2032 = vand.u32 2147483647, %v2000
        %v2033 = vand.u32 2147483647, %v2001
        %v2034 = vsub.f32 0.0, %v2026
        %v2035 = vsub.f32 0.0, %v2027
        %v2036 = vsub.f32 0.0, %v2028
        %v2037 = vsub.f32 0.0, %v2029
        %v2038 = vsub.f32 0.0, %v2030
        %v2039 = vsub.f32 0.0, %v2031
        %v2040 = vsub.f32 0.0, %v2032
        %v2041 = vsub.f32 0.0, %v2033
        %v2042 = vmul.f32 %v2034, 1.442695
        %v2043 = vpow.pop %v2042
        %v2044 = vmul.f32 %v2035, 1.442695
        %v2045 = vpow.pop %v2044
        %v2046 = vmul.f32 %v2036, 1.442695
        %v2047 = vpow.pop %v2046
        %v2048 = vmul.f32 %v2037, 1.442695
        %v2049 = vpow.pop %v2048
        %v2050 = vmul.f32 %v2038, 1.442695
        %v2051 = vpow.pop %v2050
        %v2052 = vmul.f32 %v2039, 1.442695
        %v2053 = vpow.pop %v2052
        %v2054 = vmul.f32 %v2040, 1.442695
        %v2055 = vpow.pop %v2054
        %v2056 = vmul.f32 %v2041, 1.442695
        %v2057 = vpow.pop %v2056
        %v2058 = vadd.f32 %v2043, 1.0
        %v2059 = vlog2.pop %v2058
        %v2060 = vmul.f32 %v2059, 0.6931472
        %v2061 = vmul.f32 -0.5, %v2043
        %v2062 = vadd.f32 %v2061, 1.0
        %v2063 = vmul.f32 %v2062, %v2043
        %v2064 = vand.u32 2147483647, %v2043
        %vm2065 = vcmp.lt.f32.partialorder %v2064, 0.0004427343
        %v2066 = vsel %vm2065, %v2063, %v2060
        %v2067 = vadd.f32 %v2045, 1.0
        %v2068 = vlog2.pop %v2067
        %v2069 = vmul.f32 %v2068, 0.6931472
        %v2070 = vmul.f32 -0.5, %v2045
        %v2071 = vadd.f32 %v2070, 1.0
        %v2072 = vmul.f32 %v2071, %v2045
        %v2073 = vand.u32 2147483647, %v2045
        %vm2074 = vcmp.lt.f32.partialorder %v2073, 0.0004427343
        %v2075 = vsel %vm2074, %v2072, %v2069
        %v2076 = vadd.f32 %v2047, 1.0
        %v2077 = vlog2.pop %v2076
        %v2078 = vmul.f32 %v2077, 0.6931472
        %v2079 = vmul.f32 -0.5, %v2047
        %v2080 = vadd.f32 %v2079, 1.0
        %v2081 = vmul.f32 %v2080, %v2047
        %v2082 = vand.u32 2147483647, %v2047
        %vm2083 = vcmp.lt.f32.partialorder %v2082, 0.0004427343
        %v2084 = vsel %vm2083, %v2081, %v2078
        %v2085 = vadd.f32 %v2049, 1.0
        %v2086 = vlog2.pop %v2085
        %v2087 = vmul.f32 %v2086, 0.6931472
        %v2088 = vmul.f32 -0.5, %v2049
        %v2089 = vadd.f32 %v2088, 1.0
        %v2090 = vmul.f32 %v2089, %v2049
        %v2091 = vand.u32 2147483647, %v2049
        %vm2092 = vcmp.lt.f32.partialorder %v2091, 0.0004427343
        %v2093 = vsel %vm2092, %v2090, %v2087
        %v2094 = vadd.f32 %v2051, 1.0
        %v2095 = vlog2.pop %v2094
        %v2096 = vmul.f32 %v2095, 0.6931472
        %v2097 = vmul.f32 -0.5, %v2051
        %v2098 = vadd.f32 %v2097, 1.0
        %v2099 = vmul.f32 %v2098, %v2051
        %v2100 = vand.u32 2147483647, %v2051
        %vm2101 = vcmp.lt.f32.partialorder %v2100, 0.0004427343
        %v2102 = vsel %vm2101, %v2099, %v2096
        %v2103 = vadd.f32 %v2053, 1.0
        %v2104 = vlog2.pop %v2103
        %v2105 = vmul.f32 %v2104, 0.6931472
        %v2106 = vmul.f32 -0.5, %v2053
        %v2107 = vadd.f32 %v2106, 1.0
        %v2108 = vmul.f32 %v2107, %v2053
        %v2109 = vand.u32 2147483647, %v2053
        %vm2110 = vcmp.lt.f32.partialorder %v2109, 0.0004427343
        %v2111 = vsel %vm2110, %v2108, %v2105
        %v2112 = vadd.f32 %v2055, 1.0
        %v2113 = vlog2.pop %v2112
        %v2114 = vmul.f32 %v2113, 0.6931472
        %v2115 = vmul.f32 -0.5, %v2055
        %v2116 = vadd.f32 %v2115, 1.0
        %v2117 = vmul.f32 %v2116, %v2055
        %v2118 = vand.u32 2147483647, %v2055
        %vm2119 = vcmp.lt.f32.partialorder %v2118, 0.0004427343
        %v2120 = vsel %vm2119, %v2117, %v2114
        %v2121 = vadd.f32 %v2057, 1.0
        %v2122 = vlog2.pop %v2121
        %v2123 = vmul.f32 %v2122, 0.6931472
        %v2124 = vmul.f32 -0.5, %v2057
        %v2125 = vadd.f32 %v2124, 1.0
        %v2126 = vmul.f32 %v2125, %v2057
        %v2127 = vand.u32 2147483647, %v2057
        %vm2128 = vcmp.lt.f32.partialorder %v2127, 0.0004427343
        %v2129 = vsel %vm2128, %v2126, %v2123
        %v2130 = vadd.f32 %v2002, %v2066
        %v2131 = vadd.f32 %v2003, %v2075
        %v2132 = vadd.f32 %v2004, %v2084
        %v2133 = vadd.f32 %v2005, %v2093
        %v2134 = vadd.f32 %v2006, %v2102
        %v2135 = vadd.f32 %v2007, %v2111
        %v2136 = vadd.f32 %v2008, %v2120
        %v2137 = vadd.f32 %v2009, %v2129
        %v2138 = vsel %vm2010, %v2018, %v2130
        %v2139 = vsel %vm2011, %v2019, %v2131
        %v2140 = vsel %vm2012, %v2020, %v2132
        %v2141 = vsel %vm2013, %v2021, %v2133
        %v2142 = vsel %vm2014, %v2022, %v2134
        %v2143 = vsel %vm2015, %v2023, %v2135
        %v2144 = vsel %vm2016, %v2024, %v2136
        %v2145 = vsel %vm2017, %v2025, %v2137
        %v2146 = vtanh.pop %v2138
        %v2147 = vtanh.pop %v2139
        %v2148 = vtanh.pop %v2140
        %v2149 = vtanh.pop %v2141
        %v2150 = vtanh.pop %v2142
        %v2151 = vtanh.pop %v2143
        %v2152 = vtanh.pop %v2144
        %v2153 = vtanh.pop %v2145
        %v2154 = vmul.f32 %v1994, %v2146
        %v2155 = vmul.f32 %v1995, %v2147
        %v2156 = vmul.f32 %v1996, %v2148
        %v2157 = vmul.f32 %v1997, %v2149
        %v2158 = vmul.f32 %v1998, %v2150
        %v2159 = vmul.f32 %v1999, %v2151
        %v2160 = vmul.f32 %v2000, %v2152
        %v2161 = vmul.f32 %v2001, %v2153
        %v2162 = vadd.f32 %v397, %v2154
        %v2163 = vadd.f32 %v398, %v2155
        %v2164 = vadd.f32 %v399, %v2156
        %v2165 = vadd.f32 %v400, %v2157
        %v2166 = vadd.f32 %v401, %v2158
        %v2167 = vadd.f32 %v402, %v2159
        %v2168 = vadd.f32 %v403, %v2160
        %v2169 = vadd.f32 %v404, %v2161
        %2170 = vst.msk [vmem:[%s379] sm:$0xff] %vm417, %v2162
        %2171 = vst.msk [vmem:[%s379 + $0x8] sm:$0xff] %vm417, %v2163
        %2172 = vst.msk [vmem:[%s379 + $0x10] sm:$0xff] %vm417, %v2164
        %2173 = vst.msk [vmem:[%s379 + $0x18] sm:$0xff] %vm417, %v2165
        %2174 = vst.msk [vmem:[%s379 + $0x20] sm:$0xff] %vm417, %v2166
        %2175 = vst.msk [vmem:[%s379 + $0x28] sm:$0xff] %vm417, %v2167
        %2176 = vst.msk [vmem:[%s379 + $0x30] sm:$0xff] %vm417, %v2168
        %2177 = vst.msk [vmem:[%s379 + $0x38] sm:$0xff] %vm417, %v2169
        %s2178 = sand.u32 %s212, 1
        %s2179 = scalar_lea.sflag [#allocation5], %s2178
        %s2180 = sand.u32 %s212, 1
        %s2181 = smul.addr %s2180, 128
        %s2182 = scalar_lea.vmem [#allocation6], %s2181
        %p2183 = scmp.lt.s32.totalorder %s26, 1
        %s2184 = scalar_select %p2183, %s26, 1
        %s2185 = smul.addr %s2184, 8
        %s2186 = smul.addr %s2185, 8
        %s2187 = scalar_lea.vmem %s9, %s2186
        // Predicated region
        $region57: #{tpu_custom_call.1} parent=51 // pred_check
          %p2188 = pneg %p222
        $region58: #{tpu_custom_call.1} parent=51 // pred_check_branch
          %2190 = sbr.rel (%p2188) target = $region60
        $region59: #{tpu_custom_call.1} parent=51 // pred_region
          %s2192 = ssub.s32 2048, 2048
          %2193 = vsyncadd %s2179, %s2192
          %s2194 = smul.addr %s26, 16
          %s2195 = smul.addr %s2194, 128
          %s2196 = scalar_lea.hbm %s8, %s2195
          %s2197 = sshll.u32 %s2182, 4
          %s2198 = int_to_ptr.vmem [resolvable:$true] %s2197
          %2203 = dma.vmem_to_hbm [thread:$0]  %s2198, 2048, %s2196, %s2179, 256, 256, 16
        $region60: #{tpu_custom_call.1} parent=51 // pred_fallthru
          _
        // Predicated region
        $region61: #{tpu_custom_call.1} parent=51 // pred_check
          %p2204 = pneg %p248
        $region62: #{tpu_custom_call.1} parent=51 // pred_check_branch
          %2206 = sbr.rel (%p2204) target = $region64
        $region63: #{tpu_custom_call.1} parent=51 // pred_region
          _
        $region64: #{tpu_custom_call.1} parent=51 // pred_fallthru
          _
      $region52: #{tpu_custom_call.1} parent=5 // pred_fallthru
        _
      %p2207 = scmp.le.s32.totalorder 2, %s21
      // Predicated region
      $region65: #{tpu_custom_call.1} parent=5 // pred_check
        %p2208 = pneg %p2207
      $region66: #{tpu_custom_call.1} parent=5 // pred_check_branch
        %2210 = sbr.rel (%p2208) target = $region68
      $region67: #{tpu_custom_call.1} parent=5 // pred_region
        %s2211 = ssub.s32 %s21, 2
        // Predicated region
        $region69: #{tpu_custom_call.1} parent=67 // pred_check
          %p2212 = pneg %p228
        $region70: #{tpu_custom_call.1} parent=67 // pred_check_branch
          %2214 = sbr.rel (%p2212) target = $region72
        $region71: #{tpu_custom_call.1} parent=67 // pred_region
          %s2215 = sand.u32 %s213, 1
          %s2216 = scalar_lea.sflag [#allocation5], %s2215
          %s2217 = sand.u32 %s213, 1
          %s2218 = smul.addr %s2217, 128
          %s2219 = scalar_lea.vmem [#allocation6], %s2218
          %2220 = dma.done %s2216, 2048
        $region72: #{tpu_custom_call.1} parent=67 // pred_fallthru
          _
        // Predicated region
        $region73: #{tpu_custom_call.1} parent=67 // pred_check
          %p2221 = pneg %p254
        $region74: #{tpu_custom_call.1} parent=67 // pred_check_branch
          %2223 = sbr.rel (%p2221) target = $region76
        $region75: #{tpu_custom_call.1} parent=67 // pred_region
          %p2224 = scmp.lt.s32.totalorder %s27, 1
          %s2225 = scalar_select %p2224, %s27, 1
          %s2226 = smul.addr %s2225, 8
          %s2227 = smul.addr %s2226, 8
          %s2228 = scalar_lea.vmem %s9, %s2227
        $region76: #{tpu_custom_call.1} parent=67 // pred_fallthru
          _
      $region68: #{tpu_custom_call.1} parent=5 // pred_fallthru
        _
    $region6: #{tpu_custom_call.1} parent=1 // loop_footer
      %s25 = sadd.s32 1, %s21
    $region7: #{tpu_custom_call.1} parent=1 // loop_footer_branch
      %20 = sbr.rel target = $region3
    $region8: #{tpu_custom_call.1} parent=1 // loop_exit
      _
    %2229 = vsyncpa [#allocation4], 1
    %s2230 = scalar_lea.sflag [#allocation4], 1
    %2231 = vsyncpa %s2230, 1
    %2232 = vsyncpa [#allocation5], 1
    %s2233 = scalar_lea.sflag [#allocation5], 1
    %2234 = vsyncpa %s2233, 1

</llo_original>
